<compile_context>
chip_gen: v5e
topology: v5e:2x2
jax: 0.10.0
libtpu: 0.0.40
codegen_flags: <defaults>
</compile_context>

<pallas_src>
import jax
import jax.numpy as jnp
from jax.experimental import pallas as pl
from jax.experimental.pallas import tpu as pltpu

# ----- constants from the original repo (deterministic choice) -----
NODE_POS_SIZE = 24
EDGE_ADJ_SIZE = 28
FACE_ADJ_SIZE = 12

INPUT_SIZE = NODE_POS_SIZE + EDGE_ADJ_SIZE + FACE_ADJ_SIZE   # 64
HIDDEN_SIZE = INPUT_SIZE * 2                                 # 128
LATENT_SIZE = INPUT_SIZE // 2                                # 32
LATENT_PAD = 128                                             # latent padded to 128 lanes

DEFAULT_BATCH_TILE = 2048   # cap; actual tile picked per-batch (multiple of 16)
MIN_BATCH_TILE = 256        # keep per-step MXU work well above ~0.35us step overhead
TARGET_GRID_STEPS = 8       # >= 4 pipelined steps per TensorCore on v7x


def _round_up(n, m):
    return ((n + m - 1) // m) * m


def _choose_batch_tile(batch, cap):
    """Pick a batch tile: big enough to amortize per-step overhead, small enough
    that large batches still yield several grid steps per core (v7x pipelining)."""
    tb = _round_up(pl.cdiv(batch, TARGET_GRID_STEPS), 16)
    tb = max(tb, MIN_BATCH_TILE)
    tb = min(tb, cap)
    tb = min(tb, _round_up(batch, 8))   # never exceed the (8-aligned) batch
    return max(tb, 8)


def _ae_kernel(x_ref,
               w1, b1, w2, b2, w3, b3,      # encoder params (bf16 W, f32 b)
               w4, b4, w5, b5, w6, b6,      # decoder params
               o_ref):
    # x arrives f32; cast to bf16 in-kernel (VPU work hidden under the MXU).
    x = x_ref[...].astype(jnp.bfloat16)

    # ---------------- encoder ----------------
    h = jnp.dot(x, w1[...], preferred_element_type=jnp.float32) + b1[...]
    h = jnp.maximum(h, 0.0)
    h = jnp.dot(h.astype(jnp.bfloat16), w2[...],
                preferred_element_type=jnp.float32) + b2[...]
    h = jnp.maximum(h, 0.0)
    # latent (lane-padded to 128; columns >= 32 are exactly zero)
    z = jnp.dot(h.astype(jnp.bfloat16), w3[...],
                preferred_element_type=jnp.float32) + b3[...]

    # ---------------- decoder ----------------
    h = jnp.dot(z.astype(jnp.bfloat16), w4[...],
                preferred_element_type=jnp.float32) + b4[...]
    h = jnp.maximum(h, 0.0)
    h = jnp.dot(h.astype(jnp.bfloat16), w5[...],
                preferred_element_type=jnp.float32) + b5[...]
    h = jnp.maximum(h, 0.0)
    y = jnp.dot(h.astype(jnp.bfloat16), w6[...],
                preferred_element_type=jnp.float32) + b6[...]

    o_ref[...] = y.astype(o_ref.dtype)


def metamaterial_ae_forward(x, prepared_params, *,
                            batch_tile=DEFAULT_BATCH_TILE,
                            out_dtype=jnp.float32):
    """x: (batch, INPUT_SIZE) f32. prepared_params: output of prepare_params()."""
    orig_batch = x.shape[0]

    # Only pad when the batch is not 8-aligned (cheap; rare in practice). Any
    # remaining tile-granularity remainder is handled by Pallas edge-block padding
    # (padded input rows compute garbage that is never written back).
    padded = _round_up(orig_batch, 8)
    if padded != orig_batch:
        x = jnp.pad(x, ((0, padded - orig_batch), (0, 0)))

    tb = _choose_batch_tile(orig_batch, batch_tile)
    grid = (pl.cdiv(padded, tb),)

    in_specs = [pl.BlockSpec((tb, INPUT_SIZE), lambda i: (i, 0))]
    # Weights/biases: full blocks, constant index_map -> fetched once, VMEM-resident.
    in_specs += [pl.BlockSpec(p.shape, lambda i: (0, 0)) for p in prepared_params]
    out_specs = pl.BlockSpec((tb, INPUT_SIZE), lambda i: (i, 0))

    flops = 2 * padded * (INPUT_SIZE * HIDDEN_SIZE
                          + 4 * HIDDEN_SIZE * HIDDEN_SIZE
                          + HIDDEN_SIZE * INPUT_SIZE)
    param_bytes = sum(p.size * p.dtype.itemsize for p in prepared_params)
    out_itemsize = jnp.dtype(out_dtype).itemsize
    bytes_accessed = padded * INPUT_SIZE * (4 + out_itemsize) + param_bytes

    out = pl.pallas_call(
        _ae_kernel,
        out_shape=jax.ShapeDtypeStruct((padded, INPUT_SIZE), out_dtype),
        grid=grid,
        in_specs=in_specs,
        out_specs=out_specs,
        compiler_params=pltpu.CompilerParams(
            dimension_semantics=("parallel",),
            vmem_limit_bytes=32 * 1024 * 1024),   # safe on v5e/v6e/v7x
        cost_estimate=pl.CostEstimate(flops=flops, transcendentals=0,
                                      bytes_accessed=bytes_accessed),
    )(x, *prepared_params)

    if padded != orig_batch:
        out = out[:orig_batch]
    return out


def init_params(key):
    """Deterministic PyTorch-style init: U(-1/sqrt(fan_in), 1/sqrt(fan_in)).

    Weights are (in_features, out_features) f32 (transposed vs. nn.Linear so the
    kernel computes y = x @ W + b); biases are (1, out_features) f32.
    """
    dims = [
        (INPUT_SIZE, HIDDEN_SIZE),   # enc L1
        (HIDDEN_SIZE, HIDDEN_SIZE),  # enc L2
        (HIDDEN_SIZE, LATENT_SIZE),  # enc L3
        (LATENT_SIZE, HIDDEN_SIZE),  # dec L1
        (HIDDEN_SIZE, HIDDEN_SIZE),  # dec L2
        (HIDDEN_SIZE, INPUT_SIZE),   # dec L3
    ]
    params = []
    for (fan_in, fan_out) in dims:
        key, kw, kb = jax.random.split(key, 3)
        bound = 1.0 / jnp.sqrt(jnp.float32(fan_in))
        w = jax.random.uniform(kw, (fan_in, fan_out), jnp.float32,
                               minval=-bound, maxval=bound)
        b = jax.random.uniform(kb, (1, fan_out), jnp.float32,
                               minval=-bound, maxval=bound)
        params += [w, b]
    return params


def prepare_params(params_f32):
    """Pad the 32-wide latent path to 128 lanes and cast weights to bf16.

    Zero-padding w3 columns / b3 columns / w4 rows is numerically identical to the
    unpadded computation (extra lanes are exactly zero through the whole path).
    """
    w1, b1, w2, b2, w3, b3, w4, b4, w5, b5, w6, b6 = params_f32
    w3p = jnp.zeros((HIDDEN_SIZE, LATENT_PAD), jnp.float32).at[:, :LATENT_SIZE].set(w3)
    b3p = jnp.zeros((1, LATENT_PAD), jnp.float32).at[:, :LATENT_SIZE].set(b3)
    w4p = jnp.zeros((LATENT_PAD, HIDDEN_SIZE), jnp.float32).at[:LATENT_SIZE, :].set(w4)

    ws = [w1, w2, w3p, w4p, w5, w6]
    bs = [b1, b2, b3p, b4, b5, b6]
    prepared = []
    for w, b in zip(ws, bs):
        prepared += [w.astype(jnp.bfloat16), b.astype(jnp.float32)]
    return prepared


def _reference_forward_bf16(x, params_f32):
    """Pure-JAX reference mirroring the kernel's bf16-operand / f32-accumulate math."""
    w1, b1, w2, b2, w3, b3, w4, b4, w5, b5, w6, b6 = params_f32

    def mm(a, w):
        return jnp.dot(a.astype(jnp.bfloat16), w.astype(jnp.bfloat16),
                       preferred_element_type=jnp.float32)

    h = jnp.maximum(mm(x, w1) + b1, 0.0)
    h = jnp.maximum(mm(h, w2) + b2, 0.0)
    z = mm(h, w3) + b3
    h = jnp.maximum(mm(z, w4) + b4, 0.0)
    h = jnp.maximum(mm(h, w5) + b5, 0.0)
    return mm(h, w6) + b6


def _reference_forward_f32(x, params_f32):
    """Pure-f32 reference (matches the PyTorch module's semantics)."""
    w1, b1, w2, b2, w3, b3, w4, b4, w5, b5, w6, b6 = params_f32
    h = jnp.maximum(x @ w1 + b1, 0.0)
    h = jnp.maximum(h @ w2 + b2, 0.0)
    z = h @ w3 + b3
    h = jnp.maximum(z @ w4 + b4, 0.0)
    h = jnp.maximum(h @ w5 + b5, 0.0)
    return h @ w6 + b6


if __name__ == "__main__":
    key = jax.random.PRNGKey(0)
    key, kx1, kx2, kx3 = jax.random.split(key, 4)

    params_f32 = init_params(key)
    prepared = prepare_params(params_f32)

    # Multi-step grid (batch 512 -> tb 256, 2 grid steps).
    x_big = jax.random.normal(kx1, (512, INPUT_SIZE), jnp.float32)
    out_big = jax.block_until_ready(metamaterial_ae_forward(x_big, prepared))
    ref_big = _reference_forward_bf16(x_big, params_f32)
    assert out_big.shape == x_big.shape
    assert jnp.allclose(out_big, ref_big, atol=2e-3, rtol=2e-3)

    # Small ragged batch: exercises the 8-alignment padding path.
    x_small = jax.random.normal(kx2, (10, INPUT_SIZE), jnp.float32)
    out_small = jax.block_until_ready(metamaterial_ae_forward(x_small, prepared))
    ref_small = _reference_forward_bf16(x_small, params_f32)
    assert out_small.shape == x_small.shape
    assert jnp.allclose(out_small, ref_small, atol=2e-3, rtol=2e-3)

    # 8-aligned but not tile-aligned batch: exercises Pallas edge-block masking
    # (no wrapper-side pad/slice on this path).
    x_edge = jax.random.normal(kx3, (600, INPUT_SIZE), jnp.float32)
    out_edge = jax.block_until_ready(metamaterial_ae_forward(x_edge, prepared))
    ref_edge = _reference_forward_bf16(x_edge, params_f32)
    assert out_edge.shape == x_edge.shape
    assert jnp.allclose(out_edge, ref_edge, atol=2e-3, rtol=2e-3)

    # Loose sanity check against the pure-f32 PyTorch-equivalent math.
    ref_f32 = _reference_forward_f32(x_big, params_f32)
    assert jnp.allclose(out_big, ref_f32, atol=5e-2, rtol=5e-2)

    print("KERNEL_OK")
</pallas_src>

<mosaic_0001>
module attributes {stable_mosaic.version = 11 : i64} {
  func.func @_ae_kernel(%arg0: i32, %arg1: memref<256x64xf32, #tpu.memory_space<vmem>>, %arg2: memref<64x128xbf16, #tpu.memory_space<vmem>>, %arg3: memref<1x128xf32, #tpu.memory_space<vmem>>, %arg4: memref<128x128xbf16, #tpu.memory_space<vmem>>, %arg5: memref<1x128xf32, #tpu.memory_space<vmem>>, %arg6: memref<128x128xbf16, #tpu.memory_space<vmem>>, %arg7: memref<1x128xf32, #tpu.memory_space<vmem>>, %arg8: memref<128x128xbf16, #tpu.memory_space<vmem>>, %arg9: memref<1x128xf32, #tpu.memory_space<vmem>>, %arg10: memref<128x128xbf16, #tpu.memory_space<vmem>>, %arg11: memref<1x128xf32, #tpu.memory_space<vmem>>, %arg12: memref<128x64xbf16, #tpu.memory_space<vmem>>, %arg13: memref<1x64xf32, #tpu.memory_space<vmem>>, %arg14: memref<256x64xf32, #tpu.memory_space<vmem>>) attributes {dimension_semantics = [#tpu.dimension_semantics<parallel>], iteration_bounds = array<i64: 2>, scalar_prefetch = 0 : i64, scratch_operands = 0 : i64, tpu.core_type = #tpu.core_type<tc>, window_params = [{transform_indices = @transform_0, window_bounds = array<i64: 256, 64>}, {pipeline_mode = #tpu.pipeline_mode<synchronous>, transform_indices = @transform_1, window_bounds = array<i64: 64, 128>}, {pipeline_mode = #tpu.pipeline_mode<synchronous>, transform_indices = @transform_2, window_bounds = array<i64: 1, 128>}, {pipeline_mode = #tpu.pipeline_mode<synchronous>, transform_indices = @transform_3, window_bounds = array<i64: 128, 128>}, {pipeline_mode = #tpu.pipeline_mode<synchronous>, transform_indices = @transform_4, window_bounds = array<i64: 1, 128>}, {pipeline_mode = #tpu.pipeline_mode<synchronous>, transform_indices = @transform_5, window_bounds = array<i64: 128, 128>}, {pipeline_mode = #tpu.pipeline_mode<synchronous>, transform_indices = @transform_6, window_bounds = array<i64: 1, 128>}, {pipeline_mode = #tpu.pipeline_mode<synchronous>, transform_indices = @transform_7, window_bounds = array<i64: 128, 128>}, {pipeline_mode = #tpu.pipeline_mode<synchronous>, transform_indices = @transform_8, window_bounds = array<i64: 1, 128>}, {pipeline_mode = #tpu.pipeline_mode<synchronous>, transform_indices = @transform_9, window_bounds = array<i64: 128, 128>}, {pipeline_mode = #tpu.pipeline_mode<synchronous>, transform_indices = @transform_10, window_bounds = array<i64: 1, 128>}, {pipeline_mode = #tpu.pipeline_mode<synchronous>, transform_indices = @transform_11, window_bounds = array<i64: 128, 64>}, {pipeline_mode = #tpu.pipeline_mode<synchronous>, transform_indices = @transform_12, window_bounds = array<i64: 1, 64>}, {transform_indices = @transform_13, window_bounds = array<i64: 256, 64>}]} {
    %c0 = arith.constant 0 : index
    %c0_0 = arith.constant 0 : index
    %0 = vector.load %arg1[%c0, %c0_0] : memref<256x64xf32, #tpu.memory_space<vmem>>, vector<256x64xf32>
    %1 = arith.truncf %0 : vector<256x64xf32> to vector<256x64xbf16>
    %c0_1 = arith.constant 0 : index
    %c0_2 = arith.constant 0 : index
    %2 = vector.load %arg2[%c0_1, %c0_2] : memref<64x128xbf16, #tpu.memory_space<vmem>>, vector<64x128xbf16>
    %cst = arith.constant dense<0.000000e+00> : vector<256x128xf32>
    %3 = tpu.matmul %1, %2, %cst {dimension_numbers = #tpu.dot_dimension_numbers<[1], [0], [0], [1], [0, 0, 1, 1], [], []>} : vector<256x64xbf16>, vector<64x128xbf16>, vector<256x128xf32> -> vector<256x128xf32>
    %c0_3 = arith.constant 0 : index
    %c0_4 = arith.constant 0 : index
    %4 = vector.load %arg3[%c0_3, %c0_4] : memref<1x128xf32, #tpu.memory_space<vmem>>, vector<1x128xf32>
    %5 = vector.broadcast %4 : vector<1x128xf32> to vector<256x128xf32>
    %6 = arith.addf %3, %5 : vector<256x128xf32>
    %cst_5 = arith.constant 0.000000e+00 : f32
    %7 = vector.broadcast %cst_5 : f32 to vector<256x128xf32>
    %8 = arith.maximumf %6, %7 : vector<256x128xf32>
    %9 = arith.truncf %8 : vector<256x128xf32> to vector<256x128xbf16>
    %c0_6 = arith.constant 0 : index
    %c0_7 = arith.constant 0 : index
    %10 = vector.load %arg4[%c0_6, %c0_7] : memref<128x128xbf16, #tpu.memory_space<vmem>>, vector<128x128xbf16>
    %cst_8 = arith.constant dense<0.000000e+00> : vector<256x128xf32>
    %11 = tpu.matmul %9, %10, %cst_8 {dimension_numbers = #tpu.dot_dimension_numbers<[1], [0], [0], [1], [0, 0, 1, 1], [], []>} : vector<256x128xbf16>, vector<128x128xbf16>, vector<256x128xf32> -> vector<256x128xf32>
    %c0_9 = arith.constant 0 : index
    %c0_10 = arith.constant 0 : index
    %12 = vector.load %arg5[%c0_9, %c0_10] : memref<1x128xf32, #tpu.memory_space<vmem>>, vector<1x128xf32>
    %13 = vector.broadcast %12 : vector<1x128xf32> to vector<256x128xf32>
    %14 = arith.addf %11, %13 : vector<256x128xf32>
    %cst_11 = arith.constant 0.000000e+00 : f32
    %15 = vector.broadcast %cst_11 : f32 to vector<256x128xf32>
    %16 = arith.maximumf %14, %15 : vector<256x128xf32>
    %17 = arith.truncf %16 : vector<256x128xf32> to vector<256x128xbf16>
    %c0_12 = arith.constant 0 : index
    %c0_13 = arith.constant 0 : index
    %18 = vector.load %arg6[%c0_12, %c0_13] : memref<128x128xbf16, #tpu.memory_space<vmem>>, vector<128x128xbf16>
    %cst_14 = arith.constant dense<0.000000e+00> : vector<256x128xf32>
    %19 = tpu.matmul %17, %18, %cst_14 {dimension_numbers = #tpu.dot_dimension_numbers<[1], [0], [0], [1], [0, 0, 1, 1], [], []>} : vector<256x128xbf16>, vector<128x128xbf16>, vector<256x128xf32> -> vector<256x128xf32>
    %c0_15 = arith.constant 0 : index
    %c0_16 = arith.constant 0 : index
    %20 = vector.load %arg7[%c0_15, %c0_16] : memref<1x128xf32, #tpu.memory_space<vmem>>, vector<1x128xf32>
    %21 = vector.broadcast %20 : vector<1x128xf32> to vector<256x128xf32>
    %22 = arith.addf %19, %21 : vector<256x128xf32>
    %23 = arith.truncf %22 : vector<256x128xf32> to vector<256x128xbf16>
    %c0_17 = arith.constant 0 : index
    %c0_18 = arith.constant 0 : index
    %24 = vector.load %arg8[%c0_17, %c0_18] : memref<128x128xbf16, #tpu.memory_space<vmem>>, vector<128x128xbf16>
    %cst_19 = arith.constant dense<0.000000e+00> : vector<256x128xf32>
    %25 = tpu.matmul %23, %24, %cst_19 {dimension_numbers = #tpu.dot_dimension_numbers<[1], [0], [0], [1], [0, 0, 1, 1], [], []>} : vector<256x128xbf16>, vector<128x128xbf16>, vector<256x128xf32> -> vector<256x128xf32>
    %c0_20 = arith.constant 0 : index
    %c0_21 = arith.constant 0 : index
    %26 = vector.load %arg9[%c0_20, %c0_21] : memref<1x128xf32, #tpu.memory_space<vmem>>, vector<1x128xf32>
    %27 = vector.broadcast %26 : vector<1x128xf32> to vector<256x128xf32>
    %28 = arith.addf %25, %27 : vector<256x128xf32>
    %cst_22 = arith.constant 0.000000e+00 : f32
    %29 = vector.broadcast %cst_22 : f32 to vector<256x128xf32>
    %30 = arith.maximumf %28, %29 : vector<256x128xf32>
    %31 = arith.truncf %30 : vector<256x128xf32> to vector<256x128xbf16>
    %c0_23 = arith.constant 0 : index
    %c0_24 = arith.constant 0 : index
    %32 = vector.load %arg10[%c0_23, %c0_24] : memref<128x128xbf16, #tpu.memory_space<vmem>>, vector<128x128xbf16>
    %cst_25 = arith.constant dense<0.000000e+00> : vector<256x128xf32>
    %33 = tpu.matmul %31, %32, %cst_25 {dimension_numbers = #tpu.dot_dimension_numbers<[1], [0], [0], [1], [0, 0, 1, 1], [], []>} : vector<256x128xbf16>, vector<128x128xbf16>, vector<256x128xf32> -> vector<256x128xf32>
    %c0_26 = arith.constant 0 : index
    %c0_27 = arith.constant 0 : index
    %34 = vector.load %arg11[%c0_26, %c0_27] : memref<1x128xf32, #tpu.memory_space<vmem>>, vector<1x128xf32>
    %35 = vector.broadcast %34 : vector<1x128xf32> to vector<256x128xf32>
    %36 = arith.addf %33, %35 : vector<256x128xf32>
    %cst_28 = arith.constant 0.000000e+00 : f32
    %37 = vector.broadcast %cst_28 : f32 to vector<256x128xf32>
    %38 = arith.maximumf %36, %37 : vector<256x128xf32>
    %39 = arith.truncf %38 : vector<256x128xf32> to vector<256x128xbf16>
    %c0_29 = arith.constant 0 : index
    %c0_30 = arith.constant 0 : index
    %40 = vector.load %arg12[%c0_29, %c0_30] : memref<128x64xbf16, #tpu.memory_space<vmem>>, vector<128x64xbf16>
    %cst_31 = arith.constant dense<0.000000e+00> : vector<256x64xf32>
    %41 = tpu.matmul %39, %40, %cst_31 {dimension_numbers = #tpu.dot_dimension_numbers<[1], [0], [0], [1], [0, 0, 1, 1], [], []>} : vector<256x128xbf16>, vector<128x64xbf16>, vector<256x64xf32> -> vector<256x64xf32>
    %c0_32 = arith.constant 0 : index
    %c0_33 = arith.constant 0 : index
    %42 = vector.load %arg13[%c0_32, %c0_33] : memref<1x64xf32, #tpu.memory_space<vmem>>, vector<1x64xf32>
    %43 = vector.broadcast %42 : vector<1x64xf32> to vector<256x64xf32>
    %44 = arith.addf %41, %43 : vector<256x64xf32>
    %c0_34 = arith.constant 0 : index
    %c0_35 = arith.constant 0 : index
    %45 = vector.load %arg14[%c0_34, %c0_35] : memref<256x64xf32, #tpu.memory_space<vmem>>, vector<256x64xf32>
    tpu.vector_store %arg14[%c0_34, %c0_35], %44 {strides = array<i32>} : memref<256x64xf32, #tpu.memory_space<vmem>>, vector<256x64xf32>,
    return
  }
  func.func @transform_0(%arg0: i32) -> (i32, i32) {
    %c0_i32 = arith.constant 0 : i32
    %c0_i32_0 = arith.constant 0 : i32
    return %arg0, %c0_i32 : i32, i32
  }
  func.func @transform_1(%arg0: i32) -> (i32, i32) {
    %c0_i32 = arith.constant 0 : i32
    %c0_i32_0 = arith.constant 0 : i32
    %c0_i32_1 = arith.constant 0 : i32
    return %c0_i32, %c0_i32_0 : i32, i32
  }
  func.func @transform_2(%arg0: i32) -> (i32, i32) {
    %c0_i32 = arith.constant 0 : i32
    %c0_i32_0 = arith.constant 0 : i32
    %c0_i32_1 = arith.constant 0 : i32
    return %c0_i32, %c0_i32_0 : i32, i32
  }
  func.func @transform_3(%arg0: i32) -> (i32, i32) {
    %c0_i32 = arith.constant 0 : i32
    %c0_i32_0 = arith.constant 0 : i32
    %c0_i32_1 = arith.constant 0 : i32
    return %c0_i32, %c0_i32_0 : i32, i32
  }
  func.func @transform_4(%arg0: i32) -> (i32, i32) {
    %c0_i32 = arith.constant 0 : i32
    %c0_i32_0 = arith.constant 0 : i32
    %c0_i32_1 = arith.constant 0 : i32
    return %c0_i32, %c0_i32_0 : i32, i32
  }
  func.func @transform_5(%arg0: i32) -> (i32, i32) {
    %c0_i32 = arith.constant 0 : i32
    %c0_i32_0 = arith.constant 0 : i32
    %c0_i32_1 = arith.constant 0 : i32
    return %c0_i32, %c0_i32_0 : i32, i32
  }
  func.func @transform_6(%arg0: i32) -> (i32, i32) {
    %c0_i32 = arith.constant 0 : i32
    %c0_i32_0 = arith.constant 0 : i32
    %c0_i32_1 = arith.constant 0 : i32
    return %c0_i32, %c0_i32_0 : i32, i32
  }
  func.func @transform_7(%arg0: i32) -> (i32, i32) {
    %c0_i32 = arith.constant 0 : i32
    %c0_i32_0 = arith.constant 0 : i32
    %c0_i32_1 = arith.constant 0 : i32
    return %c0_i32, %c0_i32_0 : i32, i32
  }
  func.func @transform_8(%arg0: i32) -> (i32, i32) {
    %c0_i32 = arith.constant 0 : i32
    %c0_i32_0 = arith.constant 0 : i32
    %c0_i32_1 = arith.constant 0 : i32
    return %c0_i32, %c0_i32_0 : i32, i32
  }
  func.func @transform_9(%arg0: i32) -> (i32, i32) {
    %c0_i32 = arith.constant 0 : i32
    %c0_i32_0 = arith.constant 0 : i32
    %c0_i32_1 = arith.constant 0 : i32
    return %c0_i32, %c0_i32_0 : i32, i32
  }
  func.func @transform_10(%arg0: i32) -> (i32, i32) {
    %c0_i32 = arith.constant 0 : i32
    %c0_i32_0 = arith.constant 0 : i32
    %c0_i32_1 = arith.constant 0 : i32
    return %c0_i32, %c0_i32_0 : i32, i32
  }
  func.func @transform_11(%arg0: i32) -> (i32, i32) {
    %c0_i32 = arith.constant 0 : i32
    %c0_i32_0 = arith.constant 0 : i32
    %c0_i32_1 = arith.constant 0 : i32
    return %c0_i32, %c0_i32_0 : i32, i32
  }
  func.func @transform_12(%arg0: i32) -> (i32, i32) {
    %c0_i32 = arith.constant 0 : i32
    %c0_i32_0 = arith.constant 0 : i32
    %c0_i32_1 = arith.constant 0 : i32
    return %c0_i32, %c0_i32_0 : i32, i32
  }
  func.func @transform_13(%arg0: i32) -> (i32, i32) {
    %c0_i32 = arith.constant 0 : i32
    %c0_i32_0 = arith.constant 0 : i32
    return %arg0, %c0_i32 : i32, i32
  }
}

</mosaic_0001>

<llo_original>
// kernel: tpu_custom_call.1
$region0: #{tpu_custom_call.1}
  #allocation0 [shape = 'u32[]', space=smem, size = 0x4, offset = 0x4, fixed_abs, tag = 'smem constant byte address 0x4 - core index']
  #allocation1 [shape = 'u32[72,128]{1,0:T(1,128)}', space=vmem, size = 0x9000, scoped, tag = 'internal scratch']
  %s0 = inlined_call_operand.vmem [shape: f32[512,64], index: 0, kind: input, shape index: {}]
  %s1 = inlined_call_operand.vmem [shape: bf16[64,128], index: 1, kind: input, shape index: {}]
  %s2 = inlined_call_operand.vmem [shape: f32[1,128], index: 2, kind: input, shape index: {}]
  %s3 = inlined_call_operand.vmem [shape: bf16[128,128], index: 3, kind: input, shape index: {}]
  %s4 = inlined_call_operand.vmem [shape: f32[1,128], index: 4, kind: input, shape index: {}]
  %s5 = inlined_call_operand.vmem [shape: bf16[128,128], index: 5, kind: input, shape index: {}]
  %s6 = inlined_call_operand.vmem [shape: f32[1,128], index: 6, kind: input, shape index: {}]
  %s7 = inlined_call_operand.vmem [shape: bf16[128,128], index: 7, kind: input, shape index: {}]
  %s8 = inlined_call_operand.vmem [shape: f32[1,128], index: 8, kind: input, shape index: {}]
  %s9 = inlined_call_operand.vmem [shape: bf16[128,128], index: 9, kind: input, shape index: {}]
  %s10 = inlined_call_operand.vmem [shape: f32[1,128], index: 10, kind: input, shape index: {}]
  %s11 = inlined_call_operand.vmem [shape: bf16[128,64], index: 11, kind: input, shape index: {}]
  %s12 = inlined_call_operand.vmem [shape: f32[1,64], index: 12, kind: input, shape index: {}]
  %s13 = inlined_call_operand.vmem [shape: f32[512,64], index: 13, kind: output, shape index: {}]
  %s14 = sld [smem:[#allocation0]]
  $region85: #{tpu_custom_call.1} parent=0
    _
  %s16 = ssub.s32 1, %s14
  %s17 = scalar_select 0, %s16, %s14
  loop: start=0, step=1, limit=4
  $region2: #{tpu_custom_call.1} parent=0 // loop_pre_header
    _
  $region3: #{tpu_custom_call.1} parent=0 // loop_header
    %s19 = sphi 0, %s23
    %p20 = scmp.ge.s32.totalorder %s19, 4
    %s29 = sphi 0, %s31
    %s32 = sphi 0, %s29
    %s33 = sphi 0, %s32
    %s49 = sphi 0, %s33
    %s53 = sphi 0, %s53
    %s55 = sphi 0, %s53
    %s56 = sphi 0, %s55
    %s70 = sphi 0, %s56
    %s74 = sphi 0, %s74
    %s76 = sphi 0, %s74
    %s77 = sphi 0, %s76
    %s91 = sphi 0, %s77
    %s95 = sphi 0, %s95
    %s97 = sphi 0, %s95
    %s98 = sphi 0, %s97
    %s112 = sphi 0, %s98
    %s116 = sphi 0, %s116
    %s118 = sphi 0, %s116
    %s119 = sphi 0, %s118
    %s133 = sphi 0, %s119
    %s137 = sphi 0, %s137
    %s139 = sphi 0, %s137
    %s140 = sphi 0, %s139
    %s154 = sphi 0, %s140
    %s158 = sphi 0, %s158
    %s160 = sphi 0, %s158
    %s161 = sphi 0, %s160
    %s175 = sphi 0, %s161
    %s179 = sphi 0, %s179
    %s181 = sphi 0, %s179
    %s182 = sphi 0, %s181
    %s196 = sphi 0, %s182
    %s200 = sphi 0, %s200
    %s202 = sphi 0, %s200
    %s203 = sphi 0, %s202
    %s217 = sphi 0, %s203
    %s221 = sphi 0, %s221
    %s223 = sphi 0, %s221
    %s224 = sphi 0, %s223
    %s238 = sphi 0, %s224
    %s242 = sphi 0, %s242
    %s244 = sphi 0, %s242
    %s245 = sphi 0, %s244
    %s259 = sphi 0, %s245
    %s263 = sphi 0, %s263
    %s265 = sphi 0, %s263
    %s266 = sphi 0, %s265
    %s280 = sphi 0, %s266
    %s284 = sphi 0, %s284
    %s286 = sphi 0, %s284
    %s287 = sphi 0, %s286
    %s301 = sphi 0, %s287
    %s307 = sphi 0, %s309
    %s310 = sphi 0, %s307
    %s311 = sphi 0, %s310
    %s327 = sphi 0, %s311
  $region4: #{tpu_custom_call.1} parent=0 // loop_header_branch
    %22 = sbr.rel (%p20) target = $region8
  $region5: #{tpu_custom_call.1} parent=0 // loop_body
    %s24 = ssub.s32 %s19, 1
    %s25 = ssub.s32 %s19, 2
    %s26 = sadd.s32 %s19, 1
    %s27 = ssub.s32 %s19, %s26
    %p28 = scmp.eq.s32.totalorder %s27, 0
    %s30 = sadd.s32 %s29, 1
    %s31 = scalar_select %p28, %s29, %s30
    %p34 = pneg %p28
    %p35 = scmp.eq.s32.totalorder %s19, 1
    %p36 = por %p34, %p35
    %p37 = scmp.ne.s32.totalorder %s29, %s32
    %p38 = scmp.eq.s32.totalorder %s19, 0
    %p39 = por %p37, %p38
    %p40 = scmp.ne.s32.totalorder %s29, %s32
    %p41 = scmp.eq.s32.totalorder %s24, 1
    %p42 = por %p40, %p41
    %p43 = scmp.ne.s32.totalorder %s32, %s33
    %p44 = scmp.eq.s32.totalorder %s24, 0
    %p45 = por %p43, %p44
    %p46 = scmp.ne.s32.totalorder %s32, %s33
    %p47 = scmp.eq.s32.totalorder %s25, 1
    %p48 = por %p46, %p47
    %p50 = scmp.ne.s32.totalorder %s33, %s49
    %p51 = scmp.eq.s32.totalorder %s25, 0
    %p52 = por %p50, %p51
    %s54 = sadd.s32 %s53, 1
    %p57 = scmp.eq.s32.totalorder %s19, 1
    %p58 = scmp.ne.s32.totalorder %s53, %s55
    %p59 = scmp.eq.s32.totalorder %s19, 0
    %p60 = por %p58, %p59
    %p61 = scmp.ne.s32.totalorder %s53, %s55
    %p62 = scmp.eq.s32.totalorder %s24, 1
    %p63 = por %p61, %p62
    %p64 = scmp.ne.s32.totalorder %s55, %s56
    %p65 = scmp.eq.s32.totalorder %s24, 0
    %p66 = por %p64, %p65
    %p67 = scmp.ne.s32.totalorder %s55, %s56
    %p68 = scmp.eq.s32.totalorder %s25, 1
    %p69 = por %p67, %p68
    %p71 = scmp.ne.s32.totalorder %s56, %s70
    %p72 = scmp.eq.s32.totalorder %s25, 0
    %p73 = por %p71, %p72
    %s75 = sadd.s32 %s74, 1
    %p78 = scmp.eq.s32.totalorder %s19, 1
    %p79 = scmp.ne.s32.totalorder %s74, %s76
    %p80 = scmp.eq.s32.totalorder %s19, 0
    %p81 = por %p79, %p80
    %p82 = scmp.ne.s32.totalorder %s74, %s76
    %p83 = scmp.eq.s32.totalorder %s24, 1
    %p84 = por %p82, %p83
    %p85 = scmp.ne.s32.totalorder %s76, %s77
    %p86 = scmp.eq.s32.totalorder %s24, 0
    %p87 = por %p85, %p86
    %p88 = scmp.ne.s32.totalorder %s76, %s77
    %p89 = scmp.eq.s32.totalorder %s25, 1
    %p90 = por %p88, %p89
    %p92 = scmp.ne.s32.totalorder %s77, %s91
    %p93 = scmp.eq.s32.totalorder %s25, 0
    %p94 = por %p92, %p93
    %s96 = sadd.s32 %s95, 1
    %p99 = scmp.eq.s32.totalorder %s19, 1
    %p100 = scmp.ne.s32.totalorder %s95, %s97
    %p101 = scmp.eq.s32.totalorder %s19, 0
    %p102 = por %p100, %p101
    %p103 = scmp.ne.s32.totalorder %s95, %s97
    %p104 = scmp.eq.s32.totalorder %s24, 1
    %p105 = por %p103, %p104
    %p106 = scmp.ne.s32.totalorder %s97, %s98
    %p107 = scmp.eq.s32.totalorder %s24, 0
    %p108 = por %p106, %p107
    %p109 = scmp.ne.s32.totalorder %s97, %s98
    %p110 = scmp.eq.s32.totalorder %s25, 1
    %p111 = por %p109, %p110
    %p113 = scmp.ne.s32.totalorder %s98, %s112
    %p114 = scmp.eq.s32.totalorder %s25, 0
    %p115 = por %p113, %p114
    %s117 = sadd.s32 %s116, 1
    %p120 = scmp.eq.s32.totalorder %s19, 1
    %p121 = scmp.ne.s32.totalorder %s116, %s118
    %p122 = scmp.eq.s32.totalorder %s19, 0
    %p123 = por %p121, %p122
    %p124 = scmp.ne.s32.totalorder %s116, %s118
    %p125 = scmp.eq.s32.totalorder %s24, 1
    %p126 = por %p124, %p125
    %p127 = scmp.ne.s32.totalorder %s118, %s119
    %p128 = scmp.eq.s32.totalorder %s24, 0
    %p129 = por %p127, %p128
    %p130 = scmp.ne.s32.totalorder %s118, %s119
    %p131 = scmp.eq.s32.totalorder %s25, 1
    %p132 = por %p130, %p131
    %p134 = scmp.ne.s32.totalorder %s119, %s133
    %p135 = scmp.eq.s32.totalorder %s25, 0
    %p136 = por %p134, %p135
    %s138 = sadd.s32 %s137, 1
    %p141 = scmp.eq.s32.totalorder %s19, 1
    %p142 = scmp.ne.s32.totalorder %s137, %s139
    %p143 = scmp.eq.s32.totalorder %s19, 0
    %p144 = por %p142, %p143
    %p145 = scmp.ne.s32.totalorder %s137, %s139
    %p146 = scmp.eq.s32.totalorder %s24, 1
    %p147 = por %p145, %p146
    %p148 = scmp.ne.s32.totalorder %s139, %s140
    %p149 = scmp.eq.s32.totalorder %s24, 0
    %p150 = por %p148, %p149
    %p151 = scmp.ne.s32.totalorder %s139, %s140
    %p152 = scmp.eq.s32.totalorder %s25, 1
    %p153 = por %p151, %p152
    %p155 = scmp.ne.s32.totalorder %s140, %s154
    %p156 = scmp.eq.s32.totalorder %s25, 0
    %p157 = por %p155, %p156
    %s159 = sadd.s32 %s158, 1
    %p162 = scmp.eq.s32.totalorder %s19, 1
    %p163 = scmp.ne.s32.totalorder %s158, %s160
    %p164 = scmp.eq.s32.totalorder %s19, 0
    %p165 = por %p163, %p164
    %p166 = scmp.ne.s32.totalorder %s158, %s160
    %p167 = scmp.eq.s32.totalorder %s24, 1
    %p168 = por %p166, %p167
    %p169 = scmp.ne.s32.totalorder %s160, %s161
    %p170 = scmp.eq.s32.totalorder %s24, 0
    %p171 = por %p169, %p170
    %p172 = scmp.ne.s32.totalorder %s160, %s161
    %p173 = scmp.eq.s32.totalorder %s25, 1
    %p174 = por %p172, %p173
    %p176 = scmp.ne.s32.totalorder %s161, %s175
    %p177 = scmp.eq.s32.totalorder %s25, 0
    %p178 = por %p176, %p177
    %s180 = sadd.s32 %s179, 1
    %p183 = scmp.eq.s32.totalorder %s19, 1
    %p184 = scmp.ne.s32.totalorder %s179, %s181
    %p185 = scmp.eq.s32.totalorder %s19, 0
    %p186 = por %p184, %p185
    %p187 = scmp.ne.s32.totalorder %s179, %s181
    %p188 = scmp.eq.s32.totalorder %s24, 1
    %p189 = por %p187, %p188
    %p190 = scmp.ne.s32.totalorder %s181, %s182
    %p191 = scmp.eq.s32.totalorder %s24, 0
    %p192 = por %p190, %p191
    %p193 = scmp.ne.s32.totalorder %s181, %s182
    %p194 = scmp.eq.s32.totalorder %s25, 1
    %p195 = por %p193, %p194
    %p197 = scmp.ne.s32.totalorder %s182, %s196
    %p198 = scmp.eq.s32.totalorder %s25, 0
    %p199 = por %p197, %p198
    %s201 = sadd.s32 %s200, 1
    %p204 = scmp.eq.s32.totalorder %s19, 1
    %p205 = scmp.ne.s32.totalorder %s200, %s202
    %p206 = scmp.eq.s32.totalorder %s19, 0
    %p207 = por %p205, %p206
    %p208 = scmp.ne.s32.totalorder %s200, %s202
    %p209 = scmp.eq.s32.totalorder %s24, 1
    %p210 = por %p208, %p209
    %p211 = scmp.ne.s32.totalorder %s202, %s203
    %p212 = scmp.eq.s32.totalorder %s24, 0
    %p213 = por %p211, %p212
    %p214 = scmp.ne.s32.totalorder %s202, %s203
    %p215 = scmp.eq.s32.totalorder %s25, 1
    %p216 = por %p214, %p215
    %p218 = scmp.ne.s32.totalorder %s203, %s217
    %p219 = scmp.eq.s32.totalorder %s25, 0
    %p220 = por %p218, %p219
    %s222 = sadd.s32 %s221, 1
    %p225 = scmp.eq.s32.totalorder %s19, 1
    %p226 = scmp.ne.s32.totalorder %s221, %s223
    %p227 = scmp.eq.s32.totalorder %s19, 0
    %p228 = por %p226, %p227
    %p229 = scmp.ne.s32.totalorder %s221, %s223
    %p230 = scmp.eq.s32.totalorder %s24, 1
    %p231 = por %p229, %p230
    %p232 = scmp.ne.s32.totalorder %s223, %s224
    %p233 = scmp.eq.s32.totalorder %s24, 0
    %p234 = por %p232, %p233
    %p235 = scmp.ne.s32.totalorder %s223, %s224
    %p236 = scmp.eq.s32.totalorder %s25, 1
    %p237 = por %p235, %p236
    %p239 = scmp.ne.s32.totalorder %s224, %s238
    %p240 = scmp.eq.s32.totalorder %s25, 0
    %p241 = por %p239, %p240
    %s243 = sadd.s32 %s242, 1
    %p246 = scmp.eq.s32.totalorder %s19, 1
    %p247 = scmp.ne.s32.totalorder %s242, %s244
    %p248 = scmp.eq.s32.totalorder %s19, 0
    %p249 = por %p247, %p248
    %p250 = scmp.ne.s32.totalorder %s242, %s244
    %p251 = scmp.eq.s32.totalorder %s24, 1
    %p252 = por %p250, %p251
    %p253 = scmp.ne.s32.totalorder %s244, %s245
    %p254 = scmp.eq.s32.totalorder %s24, 0
    %p255 = por %p253, %p254
    %p256 = scmp.ne.s32.totalorder %s244, %s245
    %p257 = scmp.eq.s32.totalorder %s25, 1
    %p258 = por %p256, %p257
    %p260 = scmp.ne.s32.totalorder %s245, %s259
    %p261 = scmp.eq.s32.totalorder %s25, 0
    %p262 = por %p260, %p261
    %s264 = sadd.s32 %s263, 1
    %p267 = scmp.eq.s32.totalorder %s19, 1
    %p268 = scmp.ne.s32.totalorder %s263, %s265
    %p269 = scmp.eq.s32.totalorder %s19, 0
    %p270 = por %p268, %p269
    %p271 = scmp.ne.s32.totalorder %s263, %s265
    %p272 = scmp.eq.s32.totalorder %s24, 1
    %p273 = por %p271, %p272
    %p274 = scmp.ne.s32.totalorder %s265, %s266
    %p275 = scmp.eq.s32.totalorder %s24, 0
    %p276 = por %p274, %p275
    %p277 = scmp.ne.s32.totalorder %s265, %s266
    %p278 = scmp.eq.s32.totalorder %s25, 1
    %p279 = por %p277, %p278
    %p281 = scmp.ne.s32.totalorder %s266, %s280
    %p282 = scmp.eq.s32.totalorder %s25, 0
    %p283 = por %p281, %p282
    %s285 = sadd.s32 %s284, 1
    %p288 = scmp.eq.s32.totalorder %s19, 1
    %p289 = scmp.ne.s32.totalorder %s284, %s286
    %p290 = scmp.eq.s32.totalorder %s19, 0
    %p291 = por %p289, %p290
    %p292 = scmp.ne.s32.totalorder %s284, %s286
    %p293 = scmp.eq.s32.totalorder %s24, 1
    %p294 = por %p292, %p293
    %p295 = scmp.ne.s32.totalorder %s286, %s287
    %p296 = scmp.eq.s32.totalorder %s24, 0
    %p297 = por %p295, %p296
    %p298 = scmp.ne.s32.totalorder %s286, %s287
    %p299 = scmp.eq.s32.totalorder %s25, 1
    %p300 = por %p298, %p299
    %p302 = scmp.ne.s32.totalorder %s287, %s301
    %p303 = scmp.eq.s32.totalorder %s25, 0
    %p304 = por %p302, %p303
    %s305 = ssub.s32 %s19, %s26
    %p306 = scmp.eq.s32.totalorder %s305, 0
    %s308 = sadd.s32 %s307, 1
    %s309 = scalar_select %p306, %s307, %s308
    %p312 = pneg %p306
    %p313 = scmp.eq.s32.totalorder %s19, 1
    %p314 = por %p312, %p313
    %p315 = scmp.ne.s32.totalorder %s307, %s310
    %p316 = scmp.eq.s32.totalorder %s19, 0
    %p317 = por %p315, %p316
    %p318 = scmp.ne.s32.totalorder %s307, %s310
    %p319 = scmp.eq.s32.totalorder %s24, 1
    %p320 = por %p318, %p319
    %p321 = scmp.ne.s32.totalorder %s310, %s311
    %p322 = scmp.eq.s32.totalorder %s24, 0
    %p323 = por %p321, %p322
    %p324 = scmp.ne.s32.totalorder %s310, %s311
    %p325 = scmp.eq.s32.totalorder %s25, 1
    %p326 = por %p324, %p325
    %p328 = scmp.ne.s32.totalorder %s311, %s327
    %p329 = scmp.eq.s32.totalorder %s25, 0
    %p330 = por %p328, %p329
    %p331 = scmp.le.s32.totalorder 1, %s19
    %p332 = scmp.lt.s32.totalorder %s19, 3
    %p333 = pnand %p331, %p332
    %p334 = pneg %p333
    // Predicated region
    $region9: #{tpu_custom_call.1} parent=5 // pred_check
      _
    $region10: #{tpu_custom_call.1} parent=5 // pred_check_branch
      %336 = sbr.rel (%p333) target = $region12
    $region11: #{tpu_custom_call.1} parent=5 // pred_region
      %s337 = ssub.s32 %s19, 1
      // Predicated region
      $region13: #{tpu_custom_call.1} parent=11 // pred_check
        %p338 = pneg %p66
      $region14: #{tpu_custom_call.1} parent=11 // pred_check_branch
        %340 = sbr.rel (%p338) target = $region16
      $region15: #{tpu_custom_call.1} parent=11 // pred_region
        _
      $region16: #{tpu_custom_call.1} parent=11 // pred_fallthru
        _
      // Predicated region
      $region17: #{tpu_custom_call.1} parent=11 // pred_check
        %p341 = pneg %p87
      $region18: #{tpu_custom_call.1} parent=11 // pred_check_branch
        %343 = sbr.rel (%p341) target = $region20
      $region19: #{tpu_custom_call.1} parent=11 // pred_region
        _
      $region20: #{tpu_custom_call.1} parent=11 // pred_fallthru
        _
      // Predicated region
      $region21: #{tpu_custom_call.1} parent=11 // pred_check
        %p344 = pneg %p108
      $region22: #{tpu_custom_call.1} parent=11 // pred_check_branch
        %346 = sbr.rel (%p344) target = $region24
      $region23: #{tpu_custom_call.1} parent=11 // pred_region
        _
      $region24: #{tpu_custom_call.1} parent=11 // pred_fallthru
        _
      // Predicated region
      $region25: #{tpu_custom_call.1} parent=11 // pred_check
        %p347 = pneg %p129
      $region26: #{tpu_custom_call.1} parent=11 // pred_check_branch
        %349 = sbr.rel (%p347) target = $region28
      $region27: #{tpu_custom_call.1} parent=11 // pred_region
        _
      $region28: #{tpu_custom_call.1} parent=11 // pred_fallthru
        _
      // Predicated region
      $region29: #{tpu_custom_call.1} parent=11 // pred_check
        %p350 = pneg %p150
      $region30: #{tpu_custom_call.1} parent=11 // pred_check_branch
        %352 = sbr.rel (%p350) target = $region32
      $region31: #{tpu_custom_call.1} parent=11 // pred_region
        _
      $region32: #{tpu_custom_call.1} parent=11 // pred_fallthru
        _
      // Predicated region
      $region33: #{tpu_custom_call.1} parent=11 // pred_check
        %p353 = pneg %p171
      $region34: #{tpu_custom_call.1} parent=11 // pred_check_branch
        %355 = sbr.rel (%p353) target = $region36
      $region35: #{tpu_custom_call.1} parent=11 // pred_region
        _
      $region36: #{tpu_custom_call.1} parent=11 // pred_fallthru
        _
      // Predicated region
      $region37: #{tpu_custom_call.1} parent=11 // pred_check
        %p356 = pneg %p192
      $region38: #{tpu_custom_call.1} parent=11 // pred_check_branch
        %358 = sbr.rel (%p356) target = $region40
      $region39: #{tpu_custom_call.1} parent=11 // pred_region
        _
      $region40: #{tpu_custom_call.1} parent=11 // pred_fallthru
        _
      // Predicated region
      $region41: #{tpu_custom_call.1} parent=11 // pred_check
        %p359 = pneg %p213
      $region42: #{tpu_custom_call.1} parent=11 // pred_check_branch
        %361 = sbr.rel (%p359) target = $region44
      $region43: #{tpu_custom_call.1} parent=11 // pred_region
        _
      $region44: #{tpu_custom_call.1} parent=11 // pred_fallthru
        _
      // Predicated region
      $region45: #{tpu_custom_call.1} parent=11 // pred_check
        %p362 = pneg %p234
      $region46: #{tpu_custom_call.1} parent=11 // pred_check_branch
        %364 = sbr.rel (%p362) target = $region48
      $region47: #{tpu_custom_call.1} parent=11 // pred_region
        _
      $region48: #{tpu_custom_call.1} parent=11 // pred_fallthru
        _
      // Predicated region
      $region49: #{tpu_custom_call.1} parent=11 // pred_check
        %p365 = pneg %p255
      $region50: #{tpu_custom_call.1} parent=11 // pred_check_branch
        %367 = sbr.rel (%p365) target = $region52
      $region51: #{tpu_custom_call.1} parent=11 // pred_region
        _
      $region52: #{tpu_custom_call.1} parent=11 // pred_fallthru
        _
      // Predicated region
      $region53: #{tpu_custom_call.1} parent=11 // pred_check
        %p368 = pneg %p276
      $region54: #{tpu_custom_call.1} parent=11 // pred_check_branch
        %370 = sbr.rel (%p368) target = $region56
      $region55: #{tpu_custom_call.1} parent=11 // pred_region
        _
      $region56: #{tpu_custom_call.1} parent=11 // pred_fallthru
        _
      // Predicated region
      $region57: #{tpu_custom_call.1} parent=11 // pred_check
        %p371 = pneg %p297
      $region58: #{tpu_custom_call.1} parent=11 // pred_check_branch
        %373 = sbr.rel (%p371) target = $region60
      $region59: #{tpu_custom_call.1} parent=11 // pred_region
        _
      $region60: #{tpu_custom_call.1} parent=11 // pred_fallthru
        _
    $region12: #{tpu_custom_call.1} parent=5 // pred_fallthru
      _
    %p374 = scmp.lt.s32.totalorder %s19, 2
    // Predicated region
    $region61: #{tpu_custom_call.1} parent=5 // pred_check
      %p375 = pneg %p374
    $region62: #{tpu_custom_call.1} parent=5 // pred_check_branch
      %377 = sbr.rel (%p375) target = $region64
    $region63: #{tpu_custom_call.1} parent=5 // pred_region
      // Predicated region
      $region65: #{tpu_custom_call.1} parent=63 // pred_check
        %p378 = pneg %p39
      $region66: #{tpu_custom_call.1} parent=63 // pred_check_branch
        %380 = sbr.rel (%p378) target = $region68
      $region67: #{tpu_custom_call.1} parent=63 // pred_region
        %s381 = smul.u32 32, %s19
        %p382 = scmp.lt.s32.totalorder %s381, 63
        %s383 = scalar_select %p382, %s381, 63
        %s384 = smul.addr %s383, 8
        %s385 = scalar_lea.vmem %s0, %s384
        %s386 = smul.u32 32, %s19
      $region68: #{tpu_custom_call.1} parent=63 // pred_fallthru
        _
    $region64: #{tpu_custom_call.1} parent=5 // pred_fallthru
      _
    %p387 = scmp.le.s32.totalorder 1, %s19
    %p388 = scmp.lt.s32.totalorder %s19, 3
    %p389 = pnand %p387, %p388
    %p390 = pneg %p389
    // Predicated region
    $region69: #{tpu_custom_call.1} parent=5 // pred_check
      _
    $region70: #{tpu_custom_call.1} parent=5 // pred_check_branch
      %392 = sbr.rel (%p389) target = $region72
    $region71: #{tpu_custom_call.1} parent=5 // pred_region
      %s393 = ssub.s32 %s19, 1
      %s394 = smul.u32 32, %s24
      %p395 = scmp.lt.s32.totalorder %s394, 63
      %s396 = scalar_select %p395, %s394, 63
      %s397 = smul.addr %s396, 8
      %s398 = scalar_lea.vmem %s0, %s397
      %p399 = pneg %p45
      %p400 = pneg %p42
      %p401 = pneg %p66
      %p402 = pneg %p63
      %p403 = pneg %p87
      %p404 = pneg %p84
      %p405 = pneg %p108
      %p406 = pneg %p105
      %p407 = pneg %p129
      %p408 = pneg %p126
      %p409 = pneg %p150
      %p410 = pneg %p147
      %p411 = pneg %p171
      %p412 = pneg %p168
      %p413 = pneg %p192
      %p414 = pneg %p189
      %p415 = pneg %p213
      %p416 = pneg %p210
      %p417 = pneg %p234
      %p418 = pneg %p231
      %p419 = pneg %p255
      %p420 = pneg %p252
      %p421 = pneg %p276
      %p422 = pneg %p273
      %p423 = pneg %p297
      %p424 = pneg %p294
      %p425 = pneg %p323
      %p426 = pneg %p320
      %s427 = smul.u32 32, %s24
      %p428 = scmp.lt.s32.totalorder %s427, 63
      %s429 = scalar_select %p428, %s427, 63
      %s430 = smul.addr %s429, 8
      %s431 = scalar_lea.vmem %s13, %s430
      %s432 = smul.u32 32, %s24
      %p433 = scmp.lt.s32.totalorder %s432, 63
      %s434 = scalar_select %p433, %s432, 63
      %s435 = smul.addr %s434, 8
      %s436 = scalar_lea.vmem %s0, %s435
      %s437 = smul.u32 32, %s24
      %s438 = smul.u32 32, %s24
      %p439 = scmp.lt.s32.totalorder %s438, 63
      %s440 = scalar_select %p439, %s438, 63
      %s441 = smul.addr %s440, 8
      %s442 = scalar_lea.vmem %s13, %s441
      %s443 = smul.u32 32, %s24
      %v445 = vld [vmem:[%s436] sm:$0xff]
      %v446 = vld [vmem:[%s436 + $0x8] sm:$0xff]
      %v447 = vld [vmem:[%s436 + $0x10] sm:$0xff]
      %v448 = vld [vmem:[%s436 + $0x18] sm:$0xff]
      %v449 = vld [vmem:[%s436 + $0x20] sm:$0xff]
      %v450 = vld [vmem:[%s436 + $0x28] sm:$0xff]
      %v451 = vld [vmem:[%s436 + $0x30] sm:$0xff]
      %v452 = vld [vmem:[%s436 + $0x38] sm:$0xff]
      %v453 = vld [vmem:[%s436 + $0x40] sm:$0xff]
      %v454 = vld [vmem:[%s436 + $0x48] sm:$0xff]
      %v455 = vld [vmem:[%s436 + $0x50] sm:$0xff]
      %v456 = vld [vmem:[%s436 + $0x58] sm:$0xff]
      %v457 = vld [vmem:[%s436 + $0x60] sm:$0xff]
      %v458 = vld [vmem:[%s436 + $0x68] sm:$0xff]
      %v459 = vld [vmem:[%s436 + $0x70] sm:$0xff]
      %v460 = vld [vmem:[%s436 + $0x78] sm:$0xff]
      %v461 = vld [vmem:[%s436 + $0x80] sm:$0xff]
      %v462 = vld [vmem:[%s436 + $0x88] sm:$0xff]
      %v463 = vld [vmem:[%s436 + $0x90] sm:$0xff]
      %v464 = vld [vmem:[%s436 + $0x98] sm:$0xff]
      %v465 = vld [vmem:[%s436 + $0xa0] sm:$0xff]
      %v466 = vld [vmem:[%s436 + $0xa8] sm:$0xff]
      %v467 = vld [vmem:[%s436 + $0xb0] sm:$0xff]
      %v468 = vld [vmem:[%s436 + $0xb8] sm:$0xff]
      %v469 = vld [vmem:[%s436 + $0xc0] sm:$0xff]
      %v470 = vld [vmem:[%s436 + $0xc8] sm:$0xff]
      %v471 = vld [vmem:[%s436 + $0xd0] sm:$0xff]
      %v472 = vld [vmem:[%s436 + $0xd8] sm:$0xff]
      %v473 = vld [vmem:[%s436 + $0xe0] sm:$0xff]
      %v474 = vld [vmem:[%s436 + $0xe8] sm:$0xff]
      %v475 = vld [vmem:[%s436 + $0xf0] sm:$0xff]
      %v476 = vld [vmem:[%s436 + $0xf8] sm:$0xff]
      %v477 = vpack.c.bf16 %v446, %v445
      %v478 = vpack.c.bf16 %v448, %v447
      %v479 = vpack.c.bf16 %v450, %v449
      %v480 = vpack.c.bf16 %v452, %v451
      %v481 = vpack.c.bf16 %v454, %v453
      %v482 = vpack.c.bf16 %v456, %v455
      %v483 = vpack.c.bf16 %v458, %v457
      %v484 = vpack.c.bf16 %v460, %v459
      %v485 = vpack.c.bf16 %v462, %v461
      %v486 = vpack.c.bf16 %v464, %v463
      %v487 = vpack.c.bf16 %v466, %v465
      %v488 = vpack.c.bf16 %v468, %v467
      %v489 = vpack.c.bf16 %v470, %v469
      %v490 = vpack.c.bf16 %v472, %v471
      %v491 = vpack.c.bf16 %v474, %v473
      %v492 = vpack.c.bf16 %v476, %v475
      %v493 = vld [vmem:[%s1] sm:$0xf]
      %v494 = vld [vmem:[%s1 + $0x4] sm:$0xf]
      %v495 = vld [vmem:[%s1 + $0x8] sm:$0xf]
      %v496 = vld [vmem:[%s1 + $0xc] sm:$0xf]
      %v497 = vld [vmem:[%s1 + $0x10] sm:$0xf]
      %v498 = vld [vmem:[%s1 + $0x14] sm:$0xf]
      %v499 = vld [vmem:[%s1 + $0x18] sm:$0xf]
      %v500 = vld [vmem:[%s1 + $0x1c] sm:$0xf]
      %v501 = vld [vmem:[%s2] sm:$0x1]
      %v503 = vperm.slane %v501, 0
      %v513 = vunpack.c.l.b16 %v493
      %v514 = vunpack.c.l.b16 %v494
      %v515 = vunpack.c.l.b16 %v495
      %v516 = vunpack.c.l.b16 %v496
      %v517 = vunpack.c.l.b16 %v497
      %v518 = vunpack.c.l.b16 %v498
      %v519 = vunpack.c.l.b16 %v499
      %v520 = vunpack.c.l.b16 %v500
      %v521 = vpack.c.b16 %v514, %v513
      %v522 = vpack.c.b16 %v516, %v515
      %v523 = vpack.c.b16 %v518, %v517
      %v524 = vpack.c.b16 %v520, %v519
      %vm529 = vcmask 523264
      %v531 = vsel %vm529, %v477, 0
      %v534 = vsel %vm529, %v478, 0
      %v537 = vsel %vm529, %v479, 0
      %v540 = vsel %vm529, %v480, 0
      %v543 = vsel %vm529, %v481, 0
      %v546 = vsel %vm529, %v482, 0
      %v549 = vsel %vm529, %v483, 0
      %v552 = vsel %vm529, %v484, 0
      %v555 = vsel %vm529, %v485, 0
      %v558 = vsel %vm529, %v486, 0
      %v561 = vsel %vm529, %v487, 0
      %v564 = vsel %vm529, %v488, 0
      %v567 = vsel %vm529, %v489, 0
      %v570 = vsel %vm529, %v490, 0
      %v573 = vsel %vm529, %v491, 0
      %v576 = vsel %vm529, %v492, 0
      %578 = vmatpush.bf16.msra.mxu0 0
      %579 = vmatpush.bf16.msra.mxu0 0
      %580 = vmatpush.bf16.msra.mxu0 0
      %581 = vmatpush.bf16.msra.mxu0 0
      %582 = vmatpush.bf16.msra.mxu0 %v524
      %583 = vmatpush.bf16.msra.mxu0 %v523
      %584 = vmatpush.bf16.msra.mxu0 %v522
      %585 = vmatpush.bf16.msra.mxu0 %v521
      %586 = vmatmul.bf16.gmra.mxu0 %v531
      %v587 = vpop.f32.mrf.mxu0
      %v588 = vadd.f32 %v503, %v587
      %v589 = vpop.f32.mrf.mxu0
      %v590 = vadd.f32 %v503, %v589
      %591 = vmatmul.bf16.gmra.mxu0 %v534
      %v592 = vpop.f32.mrf.mxu0
      %v593 = vadd.f32 %v503, %v592
      %v594 = vpop.f32.mrf.mxu0
      %v595 = vadd.f32 %v503, %v594
      %596 = vmatmul.bf16.gmra.mxu0 %v537
      %v597 = vpop.f32.mrf.mxu0
      %v598 = vadd.f32 %v503, %v597
      %v599 = vpop.f32.mrf.mxu0
      %v600 = vadd.f32 %v503, %v599
      %601 = vmatmul.bf16.gmra.mxu0 %v540
      %v602 = vpop.f32.mrf.mxu0
      %v603 = vadd.f32 %v503, %v602
      %v604 = vpop.f32.mrf.mxu0
      %v605 = vadd.f32 %v503, %v604
      %606 = vmatmul.bf16.gmra.mxu0 %v543
      %v607 = vpop.f32.mrf.mxu0
      %v608 = vadd.f32 %v503, %v607
      %v609 = vpop.f32.mrf.mxu0
      %v610 = vadd.f32 %v503, %v609
      %611 = vmatmul.bf16.gmra.mxu0 %v546
      %v612 = vpop.f32.mrf.mxu0
      %v613 = vadd.f32 %v503, %v612
      %v614 = vpop.f32.mrf.mxu0
      %v615 = vadd.f32 %v503, %v614
      %616 = vmatmul.bf16.gmra.mxu0 %v549
      %v617 = vpop.f32.mrf.mxu0
      %v618 = vadd.f32 %v503, %v617
      %v619 = vpop.f32.mrf.mxu0
      %v620 = vadd.f32 %v503, %v619
      %621 = vmatmul.bf16.gmra.mxu0 %v552
      %v622 = vpop.f32.mrf.mxu0
      %v623 = vadd.f32 %v503, %v622
      %v624 = vpop.f32.mrf.mxu0
      %v625 = vadd.f32 %v503, %v624
      %626 = vmatmul.bf16.gmra.mxu0 %v555
      %v627 = vpop.f32.mrf.mxu0
      %v628 = vadd.f32 %v503, %v627
      %v629 = vpop.f32.mrf.mxu0
      %v630 = vadd.f32 %v503, %v629
      %631 = vmatmul.bf16.gmra.mxu0 %v558
      %v632 = vpop.f32.mrf.mxu0
      %v633 = vadd.f32 %v503, %v632
      %v634 = vpop.f32.mrf.mxu0
      %v635 = vadd.f32 %v503, %v634
      %636 = vmatmul.bf16.gmra.mxu0 %v561
      %v637 = vpop.f32.mrf.mxu0
      %v638 = vadd.f32 %v503, %v637
      %v639 = vpop.f32.mrf.mxu0
      %v640 = vadd.f32 %v503, %v639
      %641 = vmatmul.bf16.gmra.mxu0 %v564
      %v642 = vpop.f32.mrf.mxu0
      %v643 = vadd.f32 %v503, %v642
      %v644 = vpop.f32.mrf.mxu0
      %v645 = vadd.f32 %v503, %v644
      %646 = vmatmul.bf16.gmra.mxu0 %v567
      %v647 = vpop.f32.mrf.mxu0
      %v648 = vadd.f32 %v503, %v647
      %v649 = vpop.f32.mrf.mxu0
      %v650 = vadd.f32 %v503, %v649
      %651 = vmatmul.bf16.gmra.mxu0 %v570
      %v652 = vpop.f32.mrf.mxu0
      %v653 = vadd.f32 %v503, %v652
      %v654 = vpop.f32.mrf.mxu0
      %v655 = vadd.f32 %v503, %v654
      %656 = vmatmul.bf16.gmra.mxu0 %v573
      %v657 = vpop.f32.mrf.mxu0
      %v658 = vadd.f32 %v503, %v657
      %v659 = vpop.f32.mrf.mxu0
      %v660 = vadd.f32 %v503, %v659
      %661 = vmatmul.bf16.gmra.mxu0 %v576
      %v662 = vpop.f32.mrf.mxu0
      %v663 = vadd.f32 %v503, %v662
      %v664 = vpop.f32.mrf.mxu0
      %v665 = vadd.f32 %v503, %v664
      %666 = vdwg.mxu0
      %v667 = vmax.f32 %v588, 0.0
      %v668 = vmax.f32 %v590, 0.0
      %v669 = vmax.f32 %v593, 0.0
      %v670 = vmax.f32 %v595, 0.0
      %v671 = vmax.f32 %v598, 0.0
      %v672 = vmax.f32 %v600, 0.0
      %v673 = vmax.f32 %v603, 0.0
      %v674 = vmax.f32 %v605, 0.0
      %v675 = vmax.f32 %v608, 0.0
      %v676 = vmax.f32 %v610, 0.0
      %v677 = vmax.f32 %v613, 0.0
      %v678 = vmax.f32 %v615, 0.0
      %v679 = vmax.f32 %v618, 0.0
      %v680 = vmax.f32 %v620, 0.0
      %v681 = vmax.f32 %v623, 0.0
      %v682 = vmax.f32 %v625, 0.0
      %v683 = vmax.f32 %v628, 0.0
      %v684 = vmax.f32 %v630, 0.0
      %v685 = vmax.f32 %v633, 0.0
      %v686 = vmax.f32 %v635, 0.0
      %v687 = vmax.f32 %v638, 0.0
      %v688 = vmax.f32 %v640, 0.0
      %v689 = vmax.f32 %v643, 0.0
      %v690 = vmax.f32 %v645, 0.0
      %v691 = vmax.f32 %v648, 0.0
      %v692 = vmax.f32 %v650, 0.0
      %v693 = vmax.f32 %v653, 0.0
      %v694 = vmax.f32 %v655, 0.0
      %v695 = vmax.f32 %v658, 0.0
      %v696 = vmax.f32 %v660, 0.0
      %v697 = vmax.f32 %v663, 0.0
      %v698 = vmax.f32 %v665, 0.0
      %v699 = vpack.c.bf16 %v668, %v667
      %v700 = vpack.c.bf16 %v670, %v669
      %v701 = vpack.c.bf16 %v672, %v671
      %v702 = vpack.c.bf16 %v674, %v673
      %v703 = vpack.c.bf16 %v676, %v675
      %v704 = vpack.c.bf16 %v678, %v677
      %v705 = vpack.c.bf16 %v680, %v679
      %v706 = vpack.c.bf16 %v682, %v681
      %v707 = vpack.c.bf16 %v684, %v683
      %v708 = vpack.c.bf16 %v686, %v685
      %v709 = vpack.c.bf16 %v688, %v687
      %v710 = vpack.c.bf16 %v690, %v689
      %v711 = vpack.c.bf16 %v692, %v691
      %v712 = vpack.c.bf16 %v694, %v693
      %v713 = vpack.c.bf16 %v696, %v695
      %v714 = vpack.c.bf16 %v698, %v697
      %v715 = vld [vmem:[%s3] sm:$0xf]
      %v716 = vld [vmem:[%s3 + $0x4] sm:$0xf]
      %v717 = vld [vmem:[%s3 + $0x8] sm:$0xf]
      %v718 = vld [vmem:[%s3 + $0xc] sm:$0xf]
      %v719 = vld [vmem:[%s3 + $0x10] sm:$0xf]
      %v720 = vld [vmem:[%s3 + $0x14] sm:$0xf]
      %v721 = vld [vmem:[%s3 + $0x18] sm:$0xf]
      %v722 = vld [vmem:[%s3 + $0x1c] sm:$0xf]
      %v723 = vld [vmem:[%s3 + $0x20] sm:$0xf]
      %v724 = vld [vmem:[%s3 + $0x24] sm:$0xf]
      %v725 = vld [vmem:[%s3 + $0x28] sm:$0xf]
      %v726 = vld [vmem:[%s3 + $0x2c] sm:$0xf]
      %v727 = vld [vmem:[%s3 + $0x30] sm:$0xf]
      %v728 = vld [vmem:[%s3 + $0x34] sm:$0xf]
      %v729 = vld [vmem:[%s3 + $0x38] sm:$0xf]
      %v730 = vld [vmem:[%s3 + $0x3c] sm:$0xf]
      %v731 = vld [vmem:[%s4] sm:$0x1]
      %v733 = vperm.slane %v731, 0
      %v751 = vunpack.c.l.b16 %v715
      %v752 = vunpack.c.l.b16 %v716
      %v753 = vunpack.c.l.b16 %v717
      %v754 = vunpack.c.l.b16 %v718
      %v755 = vunpack.c.l.b16 %v719
      %v756 = vunpack.c.l.b16 %v720
      %v757 = vunpack.c.l.b16 %v721
      %v758 = vunpack.c.l.b16 %v722
      %v759 = vunpack.c.l.b16 %v723
      %v760 = vunpack.c.l.b16 %v724
      %v761 = vunpack.c.l.b16 %v725
      %v762 = vunpack.c.l.b16 %v726
      %v763 = vunpack.c.l.b16 %v727
      %v764 = vunpack.c.l.b16 %v728
      %v765 = vunpack.c.l.b16 %v729
      %v766 = vunpack.c.l.b16 %v730
      %v767 = vpack.c.b16 %v752, %v751
      %v768 = vpack.c.b16 %v754, %v753
      %v769 = vpack.c.b16 %v756, %v755
      %v770 = vpack.c.b16 %v758, %v757
      %v771 = vpack.c.b16 %v760, %v759
      %v772 = vpack.c.b16 %v762, %v761
      %v773 = vpack.c.b16 %v764, %v763
      %v774 = vpack.c.b16 %v766, %v765
      %783 = vmatpush.bf16.msra.mxu0 %v774
      %784 = vmatpush.bf16.msra.mxu0 %v773
      %785 = vmatpush.bf16.msra.mxu0 %v772
      %786 = vmatpush.bf16.msra.mxu0 %v771
      %787 = vmatpush.bf16.msra.mxu0 %v770
      %788 = vmatpush.bf16.msra.mxu0 %v769
      %789 = vmatpush.bf16.msra.mxu0 %v768
      %790 = vmatpush.bf16.msra.mxu0 %v767
      %791 = vmatmul.bf16.gmra.mxu0 %v699
      %v792 = vpop.f32.mrf.mxu0
      %v793 = vadd.f32 %v733, %v792
      %v794 = vpop.f32.mrf.mxu0
      %v795 = vadd.f32 %v733, %v794
      %796 = vmatmul.bf16.gmra.mxu0 %v700
      %v797 = vpop.f32.mrf.mxu0
      %v798 = vadd.f32 %v733, %v797
      %v799 = vpop.f32.mrf.mxu0
      %v800 = vadd.f32 %v733, %v799
      %801 = vmatmul.bf16.gmra.mxu0 %v701
      %v802 = vpop.f32.mrf.mxu0
      %v803 = vadd.f32 %v733, %v802
      %v804 = vpop.f32.mrf.mxu0
      %v805 = vadd.f32 %v733, %v804
      %806 = vmatmul.bf16.gmra.mxu0 %v702
      %v807 = vpop.f32.mrf.mxu0
      %v808 = vadd.f32 %v733, %v807
      %v809 = vpop.f32.mrf.mxu0
      %v810 = vadd.f32 %v733, %v809
      %811 = vmatmul.bf16.gmra.mxu0 %v703
      %v812 = vpop.f32.mrf.mxu0
      %v813 = vadd.f32 %v733, %v812
      %v814 = vpop.f32.mrf.mxu0
      %v815 = vadd.f32 %v733, %v814
      %816 = vmatmul.bf16.gmra.mxu0 %v704
      %v817 = vpop.f32.mrf.mxu0
      %v818 = vadd.f32 %v733, %v817
      %v819 = vpop.f32.mrf.mxu0
      %v820 = vadd.f32 %v733, %v819
      %821 = vmatmul.bf16.gmra.mxu0 %v705
      %v822 = vpop.f32.mrf.mxu0
      %v823 = vadd.f32 %v733, %v822
      %v824 = vpop.f32.mrf.mxu0
      %v825 = vadd.f32 %v733, %v824
      %826 = vmatmul.bf16.gmra.mxu0 %v706
      %v827 = vpop.f32.mrf.mxu0
      %v828 = vadd.f32 %v733, %v827
      %v829 = vpop.f32.mrf.mxu0
      %v830 = vadd.f32 %v733, %v829
      %831 = vmatmul.bf16.gmra.mxu0 %v707
      %v832 = vpop.f32.mrf.mxu0
      %v833 = vadd.f32 %v733, %v832
      %v834 = vpop.f32.mrf.mxu0
      %v835 = vadd.f32 %v733, %v834
      %836 = vmatmul.bf16.gmra.mxu0 %v708
      %v837 = vpop.f32.mrf.mxu0
      %v838 = vadd.f32 %v733, %v837
      %v839 = vpop.f32.mrf.mxu0
      %v840 = vadd.f32 %v733, %v839
      %841 = vmatmul.bf16.gmra.mxu0 %v709
      %v842 = vpop.f32.mrf.mxu0
      %v843 = vadd.f32 %v733, %v842
      %v844 = vpop.f32.mrf.mxu0
      %v845 = vadd.f32 %v733, %v844
      %846 = vmatmul.bf16.gmra.mxu0 %v710
      %v847 = vpop.f32.mrf.mxu0
      %v848 = vadd.f32 %v733, %v847
      %v849 = vpop.f32.mrf.mxu0
      %v850 = vadd.f32 %v733, %v849
      %851 = vmatmul.bf16.gmra.mxu0 %v711
      %v852 = vpop.f32.mrf.mxu0
      %v853 = vadd.f32 %v733, %v852
      %v854 = vpop.f32.mrf.mxu0
      %v855 = vadd.f32 %v733, %v854
      %856 = vmatmul.bf16.gmra.mxu0 %v712
      %v857 = vpop.f32.mrf.mxu0
      %v858 = vadd.f32 %v733, %v857
      %v859 = vpop.f32.mrf.mxu0
      %v860 = vadd.f32 %v733, %v859
      %861 = vmatmul.bf16.gmra.mxu0 %v713
      %v862 = vpop.f32.mrf.mxu0
      %v863 = vadd.f32 %v733, %v862
      %v864 = vpop.f32.mrf.mxu0
      %v865 = vadd.f32 %v733, %v864
      %866 = vmatmul.bf16.gmra.mxu0 %v714
      %v867 = vpop.f32.mrf.mxu0
      %v868 = vadd.f32 %v733, %v867
      %v869 = vpop.f32.mrf.mxu0
      %v870 = vadd.f32 %v733, %v869
      %871 = vdwg.mxu0
      %v872 = vmax.f32 %v793, 0.0
      %v873 = vmax.f32 %v795, 0.0
      %v874 = vmax.f32 %v798, 0.0
      %v875 = vmax.f32 %v800, 0.0
      %v876 = vmax.f32 %v803, 0.0
      %v877 = vmax.f32 %v805, 0.0
      %v878 = vmax.f32 %v808, 0.0
      %v879 = vmax.f32 %v810, 0.0
      %v880 = vmax.f32 %v813, 0.0
      %v881 = vmax.f32 %v815, 0.0
      %v882 = vmax.f32 %v818, 0.0
      %v883 = vmax.f32 %v820, 0.0
      %v884 = vmax.f32 %v823, 0.0
      %v885 = vmax.f32 %v825, 0.0
      %v886 = vmax.f32 %v828, 0.0
      %v887 = vmax.f32 %v830, 0.0
      %v888 = vmax.f32 %v833, 0.0
      %v889 = vmax.f32 %v835, 0.0
      %v890 = vmax.f32 %v838, 0.0
      %v891 = vmax.f32 %v840, 0.0
      %v892 = vmax.f32 %v843, 0.0
      %v893 = vmax.f32 %v845, 0.0
      %v894 = vmax.f32 %v848, 0.0
      %v895 = vmax.f32 %v850, 0.0
      %v896 = vmax.f32 %v853, 0.0
      %v897 = vmax.f32 %v855, 0.0
      %v898 = vmax.f32 %v858, 0.0
      %v899 = vmax.f32 %v860, 0.0
      %v900 = vmax.f32 %v863, 0.0
      %v901 = vmax.f32 %v865, 0.0
      %v902 = vmax.f32 %v868, 0.0
      %v903 = vmax.f32 %v870, 0.0
      %v904 = vpack.c.bf16 %v873, %v872
      %v905 = vpack.c.bf16 %v875, %v874
      %v906 = vpack.c.bf16 %v877, %v876
      %v907 = vpack.c.bf16 %v879, %v878
      %v908 = vpack.c.bf16 %v881, %v880
      %v909 = vpack.c.bf16 %v883, %v882
      %v910 = vpack.c.bf16 %v885, %v884
      %v911 = vpack.c.bf16 %v887, %v886
      %v912 = vpack.c.bf16 %v889, %v888
      %v913 = vpack.c.bf16 %v891, %v890
      %v914 = vpack.c.bf16 %v893, %v892
      %v915 = vpack.c.bf16 %v895, %v894
      %v916 = vpack.c.bf16 %v897, %v896
      %v917 = vpack.c.bf16 %v899, %v898
      %v918 = vpack.c.bf16 %v901, %v900
      %v919 = vpack.c.bf16 %v903, %v902
      %v920 = vld [vmem:[%s5] sm:$0xf]
      %v921 = vld [vmem:[%s5 + $0x4] sm:$0xf]
      %v922 = vld [vmem:[%s5 + $0x8] sm:$0xf]
      %v923 = vld [vmem:[%s5 + $0xc] sm:$0xf]
      %v924 = vld [vmem:[%s5 + $0x10] sm:$0xf]
      %v925 = vld [vmem:[%s5 + $0x14] sm:$0xf]
      %v926 = vld [vmem:[%s5 + $0x18] sm:$0xf]
      %v927 = vld [vmem:[%s5 + $0x1c] sm:$0xf]
      %v928 = vld [vmem:[%s5 + $0x20] sm:$0xf]
      %v929 = vld [vmem:[%s5 + $0x24] sm:$0xf]
      %v930 = vld [vmem:[%s5 + $0x28] sm:$0xf]
      %v931 = vld [vmem:[%s5 + $0x2c] sm:$0xf]
      %v932 = vld [vmem:[%s5 + $0x30] sm:$0xf]
      %v933 = vld [vmem:[%s5 + $0x34] sm:$0xf]
      %v934 = vld [vmem:[%s5 + $0x38] sm:$0xf]
      %v935 = vld [vmem:[%s5 + $0x3c] sm:$0xf]
      %v936 = vld [vmem:[%s6] sm:$0x1]
      %v938 = vperm.slane %v936, 0
      %v956 = vunpack.c.l.b16 %v920
      %v957 = vunpack.c.l.b16 %v921
      %v958 = vunpack.c.l.b16 %v922
      %v959 = vunpack.c.l.b16 %v923
      %v960 = vunpack.c.l.b16 %v924
      %v961 = vunpack.c.l.b16 %v925
      %v962 = vunpack.c.l.b16 %v926
      %v963 = vunpack.c.l.b16 %v927
      %v964 = vunpack.c.l.b16 %v928
      %v965 = vunpack.c.l.b16 %v929
      %v966 = vunpack.c.l.b16 %v930
      %v967 = vunpack.c.l.b16 %v931
      %v968 = vunpack.c.l.b16 %v932
      %v969 = vunpack.c.l.b16 %v933
      %v970 = vunpack.c.l.b16 %v934
      %v971 = vunpack.c.l.b16 %v935
      %v972 = vpack.c.b16 %v957, %v956
      %v973 = vpack.c.b16 %v959, %v958
      %v974 = vpack.c.b16 %v961, %v960
      %v975 = vpack.c.b16 %v963, %v962
      %v976 = vpack.c.b16 %v965, %v964
      %v977 = vpack.c.b16 %v967, %v966
      %v978 = vpack.c.b16 %v969, %v968
      %v979 = vpack.c.b16 %v971, %v970
      %988 = vmatpush.bf16.msra.mxu0 %v979
      %989 = vmatpush.bf16.msra.mxu0 %v978
      %990 = vmatpush.bf16.msra.mxu0 %v977
      %991 = vmatpush.bf16.msra.mxu0 %v976
      %992 = vmatpush.bf16.msra.mxu0 %v975
      %993 = vmatpush.bf16.msra.mxu0 %v974
      %994 = vmatpush.bf16.msra.mxu0 %v973
      %995 = vmatpush.bf16.msra.mxu0 %v972
      %996 = vmatmul.bf16.gmra.mxu0 %v904
      %v997 = vpop.f32.mrf.mxu0
      %v998 = vadd.f32 %v938, %v997
      %v999 = vpop.f32.mrf.mxu0
      %v1000 = vadd.f32 %v938, %v999
      %1001 = vmatmul.bf16.gmra.mxu0 %v905
      %v1002 = vpop.f32.mrf.mxu0
      %v1003 = vadd.f32 %v938, %v1002
      %v1004 = vpop.f32.mrf.mxu0
      %v1005 = vadd.f32 %v938, %v1004
      %1006 = vmatmul.bf16.gmra.mxu0 %v906
      %v1007 = vpop.f32.mrf.mxu0
      %v1008 = vadd.f32 %v938, %v1007
      %v1009 = vpop.f32.mrf.mxu0
      %v1010 = vadd.f32 %v938, %v1009
      %1011 = vmatmul.bf16.gmra.mxu0 %v907
      %v1012 = vpop.f32.mrf.mxu0
      %v1013 = vadd.f32 %v938, %v1012
      %v1014 = vpop.f32.mrf.mxu0
      %v1015 = vadd.f32 %v938, %v1014
      %1016 = vmatmul.bf16.gmra.mxu0 %v908
      %v1017 = vpop.f32.mrf.mxu0
      %v1018 = vadd.f32 %v938, %v1017
      %v1019 = vpop.f32.mrf.mxu0
      %v1020 = vadd.f32 %v938, %v1019
      %1021 = vmatmul.bf16.gmra.mxu0 %v909
      %v1022 = vpop.f32.mrf.mxu0
      %v1023 = vadd.f32 %v938, %v1022
      %v1024 = vpop.f32.mrf.mxu0
      %v1025 = vadd.f32 %v938, %v1024
      %1026 = vmatmul.bf16.gmra.mxu0 %v910
      %v1027 = vpop.f32.mrf.mxu0
      %v1028 = vadd.f32 %v938, %v1027
      %v1029 = vpop.f32.mrf.mxu0
      %v1030 = vadd.f32 %v938, %v1029
      %1031 = vmatmul.bf16.gmra.mxu0 %v911
      %v1032 = vpop.f32.mrf.mxu0
      %v1033 = vadd.f32 %v938, %v1032
      %v1034 = vpop.f32.mrf.mxu0
      %v1035 = vadd.f32 %v938, %v1034
      %1036 = vmatmul.bf16.gmra.mxu0 %v912
      %v1037 = vpop.f32.mrf.mxu0
      %v1038 = vadd.f32 %v938, %v1037
      %v1039 = vpop.f32.mrf.mxu0
      %v1040 = vadd.f32 %v938, %v1039
      %1041 = vmatmul.bf16.gmra.mxu0 %v913
      %v1042 = vpop.f32.mrf.mxu0
      %v1043 = vadd.f32 %v938, %v1042
      %v1044 = vpop.f32.mrf.mxu0
      %v1045 = vadd.f32 %v938, %v1044
      %1046 = vmatmul.bf16.gmra.mxu0 %v914
      %v1047 = vpop.f32.mrf.mxu0
      %v1048 = vadd.f32 %v938, %v1047
      %v1049 = vpop.f32.mrf.mxu0
      %v1050 = vadd.f32 %v938, %v1049
      %1051 = vmatmul.bf16.gmra.mxu0 %v915
      %v1052 = vpop.f32.mrf.mxu0
      %v1053 = vadd.f32 %v938, %v1052
      %v1054 = vpop.f32.mrf.mxu0
      %v1055 = vadd.f32 %v938, %v1054
      %1056 = vmatmul.bf16.gmra.mxu0 %v916
      %v1057 = vpop.f32.mrf.mxu0
      %v1058 = vadd.f32 %v938, %v1057
      %v1059 = vpop.f32.mrf.mxu0
      %v1060 = vadd.f32 %v938, %v1059
      %1061 = vmatmul.bf16.gmra.mxu0 %v917
      %v1062 = vpop.f32.mrf.mxu0
      %v1063 = vadd.f32 %v938, %v1062
      %v1064 = vpop.f32.mrf.mxu0
      %v1065 = vadd.f32 %v938, %v1064
      %1066 = vmatmul.bf16.gmra.mxu0 %v918
      %v1067 = vpop.f32.mrf.mxu0
      %v1068 = vadd.f32 %v938, %v1067
      %v1069 = vpop.f32.mrf.mxu0
      %v1070 = vadd.f32 %v938, %v1069
      %1071 = vmatmul.bf16.gmra.mxu0 %v919
      %v1072 = vpop.f32.mrf.mxu0
      %v1073 = vadd.f32 %v938, %v1072
      %v1074 = vpop.f32.mrf.mxu0
      %v1075 = vadd.f32 %v938, %v1074
      %1076 = vdwg.mxu0
      %v1077 = vpack.c.bf16 %v1000, %v998
      %v1078 = vpack.c.bf16 %v1005, %v1003
      %v1079 = vpack.c.bf16 %v1010, %v1008
      %v1080 = vpack.c.bf16 %v1015, %v1013
      %v1081 = vpack.c.bf16 %v1020, %v1018
      %v1082 = vpack.c.bf16 %v1025, %v1023
      %v1083 = vpack.c.bf16 %v1030, %v1028
      %v1084 = vpack.c.bf16 %v1035, %v1033
      %v1085 = vpack.c.bf16 %v1040, %v1038
      %v1086 = vpack.c.bf16 %v1045, %v1043
      %v1087 = vpack.c.bf16 %v1050, %v1048
      %v1088 = vpack.c.bf16 %v1055, %v1053
      %v1089 = vpack.c.bf16 %v1060, %v1058
      %v1090 = vpack.c.bf16 %v1065, %v1063
      %v1091 = vpack.c.bf16 %v1070, %v1068
      %v1092 = vpack.c.bf16 %v1075, %v1073
      %v1093 = vld [vmem:[%s7] sm:$0xf]
      %v1094 = vld [vmem:[%s7 + $0x4] sm:$0xf]
      %v1095 = vld [vmem:[%s7 + $0x8] sm:$0xf]
      %v1096 = vld [vmem:[%s7 + $0xc] sm:$0xf]
      %v1097 = vld [vmem:[%s7 + $0x10] sm:$0xf]
      %v1098 = vld [vmem:[%s7 + $0x14] sm:$0xf]
      %v1099 = vld [vmem:[%s7 + $0x18] sm:$0xf]
      %v1100 = vld [vmem:[%s7 + $0x1c] sm:$0xf]
      %v1101 = vld [vmem:[%s7 + $0x20] sm:$0xf]
      %v1102 = vld [vmem:[%s7 + $0x24] sm:$0xf]
      %v1103 = vld [vmem:[%s7 + $0x28] sm:$0xf]
      %v1104 = vld [vmem:[%s7 + $0x2c] sm:$0xf]
      %v1105 = vld [vmem:[%s7 + $0x30] sm:$0xf]
      %v1106 = vld [vmem:[%s7 + $0x34] sm:$0xf]
      %v1107 = vld [vmem:[%s7 + $0x38] sm:$0xf]
      %v1108 = vld [vmem:[%s7 + $0x3c] sm:$0xf]
      %v1109 = vld [vmem:[%s8] sm:$0x1]
      %v1111 = vperm.slane %v1109, 0
      %v1129 = vunpack.c.l.b16 %v1093
      %v1130 = vunpack.c.l.b16 %v1094
      %v1131 = vunpack.c.l.b16 %v1095
      %v1132 = vunpack.c.l.b16 %v1096
      %v1133 = vunpack.c.l.b16 %v1097
      %v1134 = vunpack.c.l.b16 %v1098
      %v1135 = vunpack.c.l.b16 %v1099
      %v1136 = vunpack.c.l.b16 %v1100
      %v1137 = vunpack.c.l.b16 %v1101
      %v1138 = vunpack.c.l.b16 %v1102
      %v1139 = vunpack.c.l.b16 %v1103
      %v1140 = vunpack.c.l.b16 %v1104
      %v1141 = vunpack.c.l.b16 %v1105
      %v1142 = vunpack.c.l.b16 %v1106
      %v1143 = vunpack.c.l.b16 %v1107
      %v1144 = vunpack.c.l.b16 %v1108
      %v1145 = vpack.c.b16 %v1130, %v1129
      %v1146 = vpack.c.b16 %v1132, %v1131
      %v1147 = vpack.c.b16 %v1134, %v1133
      %v1148 = vpack.c.b16 %v1136, %v1135
      %v1149 = vpack.c.b16 %v1138, %v1137
      %v1150 = vpack.c.b16 %v1140, %v1139
      %v1151 = vpack.c.b16 %v1142, %v1141
      %v1152 = vpack.c.b16 %v1144, %v1143
      %1161 = vmatpush.bf16.msra.mxu0 %v1152
      %1162 = vmatpush.bf16.msra.mxu0 %v1151
      %1163 = vmatpush.bf16.msra.mxu0 %v1150
      %1164 = vmatpush.bf16.msra.mxu0 %v1149
      %1165 = vmatpush.bf16.msra.mxu0 %v1148
      %1166 = vmatpush.bf16.msra.mxu0 %v1147
      %1167 = vmatpush.bf16.msra.mxu0 %v1146
      %1168 = vmatpush.bf16.msra.mxu0 %v1145
      %1169 = vmatmul.bf16.gmra.mxu0 %v1077
      %v1170 = vpop.f32.mrf.mxu0
      %v1171 = vadd.f32 %v1111, %v1170
      %v1172 = vpop.f32.mrf.mxu0
      %v1173 = vadd.f32 %v1111, %v1172
      %1174 = vmatmul.bf16.gmra.mxu0 %v1078
      %v1175 = vpop.f32.mrf.mxu0
      %v1176 = vadd.f32 %v1111, %v1175
      %v1177 = vpop.f32.mrf.mxu0
      %v1178 = vadd.f32 %v1111, %v1177
      %1179 = vmatmul.bf16.gmra.mxu0 %v1079
      %v1180 = vpop.f32.mrf.mxu0
      %v1181 = vadd.f32 %v1111, %v1180
      %v1182 = vpop.f32.mrf.mxu0
      %v1183 = vadd.f32 %v1111, %v1182
      %1184 = vmatmul.bf16.gmra.mxu0 %v1080
      %v1185 = vpop.f32.mrf.mxu0
      %v1186 = vadd.f32 %v1111, %v1185
      %v1187 = vpop.f32.mrf.mxu0
      %v1188 = vadd.f32 %v1111, %v1187
      %1189 = vmatmul.bf16.gmra.mxu0 %v1081
      %v1190 = vpop.f32.mrf.mxu0
      %v1191 = vadd.f32 %v1111, %v1190
      %v1192 = vpop.f32.mrf.mxu0
      %v1193 = vadd.f32 %v1111, %v1192
      %1194 = vmatmul.bf16.gmra.mxu0 %v1082
      %v1195 = vpop.f32.mrf.mxu0
      %v1196 = vadd.f32 %v1111, %v1195
      %v1197 = vpop.f32.mrf.mxu0
      %v1198 = vadd.f32 %v1111, %v1197
      %1199 = vmatmul.bf16.gmra.mxu0 %v1083
      %v1200 = vpop.f32.mrf.mxu0
      %v1201 = vadd.f32 %v1111, %v1200
      %v1202 = vpop.f32.mrf.mxu0
      %v1203 = vadd.f32 %v1111, %v1202
      %1204 = vmatmul.bf16.gmra.mxu0 %v1084
      %v1205 = vpop.f32.mrf.mxu0
      %v1206 = vadd.f32 %v1111, %v1205
      %v1207 = vpop.f32.mrf.mxu0
      %v1208 = vadd.f32 %v1111, %v1207
      %1209 = vmatmul.bf16.gmra.mxu0 %v1085
      %v1210 = vpop.f32.mrf.mxu0
      %v1211 = vadd.f32 %v1111, %v1210
      %v1212 = vpop.f32.mrf.mxu0
      %v1213 = vadd.f32 %v1111, %v1212
      %1214 = vmatmul.bf16.gmra.mxu0 %v1086
      %v1215 = vpop.f32.mrf.mxu0
      %v1216 = vadd.f32 %v1111, %v1215
      %v1217 = vpop.f32.mrf.mxu0
      %v1218 = vadd.f32 %v1111, %v1217
      %1219 = vmatmul.bf16.gmra.mxu0 %v1087
      %v1220 = vpop.f32.mrf.mxu0
      %v1221 = vadd.f32 %v1111, %v1220
      %v1222 = vpop.f32.mrf.mxu0
      %v1223 = vadd.f32 %v1111, %v1222
      %1224 = vmatmul.bf16.gmra.mxu0 %v1088
      %v1225 = vpop.f32.mrf.mxu0
      %v1226 = vadd.f32 %v1111, %v1225
      %v1227 = vpop.f32.mrf.mxu0
      %v1228 = vadd.f32 %v1111, %v1227
      %1229 = vmatmul.bf16.gmra.mxu0 %v1089
      %v1230 = vpop.f32.mrf.mxu0
      %v1231 = vadd.f32 %v1111, %v1230
      %v1232 = vpop.f32.mrf.mxu0
      %v1233 = vadd.f32 %v1111, %v1232
      %1234 = vmatmul.bf16.gmra.mxu0 %v1090
      %v1235 = vpop.f32.mrf.mxu0
      %v1236 = vadd.f32 %v1111, %v1235
      %v1237 = vpop.f32.mrf.mxu0
      %v1238 = vadd.f32 %v1111, %v1237
      %1239 = vmatmul.bf16.gmra.mxu0 %v1091
      %v1240 = vpop.f32.mrf.mxu0
      %v1241 = vadd.f32 %v1111, %v1240
      %v1242 = vpop.f32.mrf.mxu0
      %v1243 = vadd.f32 %v1111, %v1242
      %1244 = vmatmul.bf16.gmra.mxu0 %v1092
      %v1245 = vpop.f32.mrf.mxu0
      %v1246 = vadd.f32 %v1111, %v1245
      %v1247 = vpop.f32.mrf.mxu0
      %v1248 = vadd.f32 %v1111, %v1247
      %1249 = vdwg.mxu0
      %v1250 = vmax.f32 %v1171, 0.0
      %v1251 = vmax.f32 %v1173, 0.0
      %v1252 = vmax.f32 %v1176, 0.0
      %v1253 = vmax.f32 %v1178, 0.0
      %v1254 = vmax.f32 %v1181, 0.0
      %v1255 = vmax.f32 %v1183, 0.0
      %v1256 = vmax.f32 %v1186, 0.0
      %v1257 = vmax.f32 %v1188, 0.0
      %v1258 = vmax.f32 %v1191, 0.0
      %v1259 = vmax.f32 %v1193, 0.0
      %v1260 = vmax.f32 %v1196, 0.0
      %v1261 = vmax.f32 %v1198, 0.0
      %v1262 = vmax.f32 %v1201, 0.0
      %v1263 = vmax.f32 %v1203, 0.0
      %v1264 = vmax.f32 %v1206, 0.0
      %v1265 = vmax.f32 %v1208, 0.0
      %v1266 = vmax.f32 %v1211, 0.0
      %v1267 = vmax.f32 %v1213, 0.0
      %v1268 = vmax.f32 %v1216, 0.0
      %v1269 = vmax.f32 %v1218, 0.0
      %v1270 = vmax.f32 %v1221, 0.0
      %v1271 = vmax.f32 %v1223, 0.0
      %v1272 = vmax.f32 %v1226, 0.0
      %v1273 = vmax.f32 %v1228, 0.0
      %v1274 = vmax.f32 %v1231, 0.0
      %v1275 = vmax.f32 %v1233, 0.0
      %v1276 = vmax.f32 %v1236, 0.0
      %v1277 = vmax.f32 %v1238, 0.0
      %v1278 = vmax.f32 %v1241, 0.0
      %v1279 = vmax.f32 %v1243, 0.0
      %v1280 = vmax.f32 %v1246, 0.0
      %v1281 = vmax.f32 %v1248, 0.0
      %v1282 = vpack.c.bf16 %v1251, %v1250
      %v1283 = vpack.c.bf16 %v1253, %v1252
      %v1284 = vpack.c.bf16 %v1255, %v1254
      %v1285 = vpack.c.bf16 %v1257, %v1256
      %v1286 = vpack.c.bf16 %v1259, %v1258
      %v1287 = vpack.c.bf16 %v1261, %v1260
      %v1288 = vpack.c.bf16 %v1263, %v1262
      %v1289 = vpack.c.bf16 %v1265, %v1264
      %v1290 = vpack.c.bf16 %v1267, %v1266
      %v1291 = vpack.c.bf16 %v1269, %v1268
      %v1292 = vpack.c.bf16 %v1271, %v1270
      %v1293 = vpack.c.bf16 %v1273, %v1272
      %v1294 = vpack.c.bf16 %v1275, %v1274
      %v1295 = vpack.c.bf16 %v1277, %v1276
      %v1296 = vpack.c.bf16 %v1279, %v1278
      %v1297 = vpack.c.bf16 %v1281, %v1280
      %v1298 = vld [vmem:[%s9] sm:$0xf]
      %v1299 = vld [vmem:[%s9 + $0x4] sm:$0xf]
      %v1300 = vld [vmem:[%s9 + $0x8] sm:$0xf]
      %v1301 = vld [vmem:[%s9 + $0xc] sm:$0xf]
      %v1302 = vld [vmem:[%s9 + $0x10] sm:$0xf]
      %v1303 = vld [vmem:[%s9 + $0x14] sm:$0xf]
      %v1304 = vld [vmem:[%s9 + $0x18] sm:$0xf]
      %v1305 = vld [vmem:[%s9 + $0x1c] sm:$0xf]
      %v1306 = vld [vmem:[%s9 + $0x20] sm:$0xf]
      %v1307 = vld [vmem:[%s9 + $0x24] sm:$0xf]
      %v1308 = vld [vmem:[%s9 + $0x28] sm:$0xf]
      %v1309 = vld [vmem:[%s9 + $0x2c] sm:$0xf]
      %v1310 = vld [vmem:[%s9 + $0x30] sm:$0xf]
      %v1311 = vld [vmem:[%s9 + $0x34] sm:$0xf]
      %v1312 = vld [vmem:[%s9 + $0x38] sm:$0xf]
      %v1313 = vld [vmem:[%s9 + $0x3c] sm:$0xf]
      %v1314 = vld [vmem:[%s10] sm:$0x1]
      %v1316 = vperm.slane %v1314, 0
      %v1334 = vunpack.c.l.b16 %v1298
      %v1335 = vunpack.c.l.b16 %v1299
      %v1336 = vunpack.c.l.b16 %v1300
      %v1337 = vunpack.c.l.b16 %v1301
      %v1338 = vunpack.c.l.b16 %v1302
      %v1339 = vunpack.c.l.b16 %v1303
      %v1340 = vunpack.c.l.b16 %v1304
      %v1341 = vunpack.c.l.b16 %v1305
      %v1342 = vunpack.c.l.b16 %v1306
      %v1343 = vunpack.c.l.b16 %v1307
      %v1344 = vunpack.c.l.b16 %v1308
      %v1345 = vunpack.c.l.b16 %v1309
      %v1346 = vunpack.c.l.b16 %v1310
      %v1347 = vunpack.c.l.b16 %v1311
      %v1348 = vunpack.c.l.b16 %v1312
      %v1349 = vunpack.c.l.b16 %v1313
      %v1350 = vpack.c.b16 %v1335, %v1334
      %v1351 = vpack.c.b16 %v1337, %v1336
      %v1352 = vpack.c.b16 %v1339, %v1338
      %v1353 = vpack.c.b16 %v1341, %v1340
      %v1354 = vpack.c.b16 %v1343, %v1342
      %v1355 = vpack.c.b16 %v1345, %v1344
      %v1356 = vpack.c.b16 %v1347, %v1346
      %v1357 = vpack.c.b16 %v1349, %v1348
      %1366 = vmatpush.bf16.msra.mxu0 %v1357
      %1367 = vmatpush.bf16.msra.mxu0 %v1356
      %1368 = vmatpush.bf16.msra.mxu0 %v1355
      %1369 = vmatpush.bf16.msra.mxu0 %v1354
      %1370 = vmatpush.bf16.msra.mxu0 %v1353
      %1371 = vmatpush.bf16.msra.mxu0 %v1352
      %1372 = vmatpush.bf16.msra.mxu0 %v1351
      %1373 = vmatpush.bf16.msra.mxu0 %v1350
      %1374 = vmatmul.bf16.gmra.mxu0 %v1282
      %v1375 = vpop.f32.mrf.mxu0
      %v1376 = vadd.f32 %v1316, %v1375
      %v1377 = vpop.f32.mrf.mxu0
      %v1378 = vadd.f32 %v1316, %v1377
      %1379 = vmatmul.bf16.gmra.mxu0 %v1283
      %v1380 = vpop.f32.mrf.mxu0
      %v1381 = vadd.f32 %v1316, %v1380
      %v1382 = vpop.f32.mrf.mxu0
      %v1383 = vadd.f32 %v1316, %v1382
      %1384 = vmatmul.bf16.gmra.mxu0 %v1284
      %v1385 = vpop.f32.mrf.mxu0
      %v1386 = vadd.f32 %v1316, %v1385
      %v1387 = vpop.f32.mrf.mxu0
      %v1388 = vadd.f32 %v1316, %v1387
      %1389 = vmatmul.bf16.gmra.mxu0 %v1285
      %v1390 = vpop.f32.mrf.mxu0
      %v1391 = vadd.f32 %v1316, %v1390
      %v1392 = vpop.f32.mrf.mxu0
      %v1393 = vadd.f32 %v1316, %v1392
      %1394 = vmatmul.bf16.gmra.mxu0 %v1286
      %v1395 = vpop.f32.mrf.mxu0
      %v1396 = vadd.f32 %v1316, %v1395
      %v1397 = vpop.f32.mrf.mxu0
      %v1398 = vadd.f32 %v1316, %v1397
      %1399 = vmatmul.bf16.gmra.mxu0 %v1287
      %v1400 = vpop.f32.mrf.mxu0
      %v1401 = vadd.f32 %v1316, %v1400
      %v1402 = vpop.f32.mrf.mxu0
      %v1403 = vadd.f32 %v1316, %v1402
      %1404 = vmatmul.bf16.gmra.mxu0 %v1288
      %v1405 = vpop.f32.mrf.mxu0
      %v1406 = vadd.f32 %v1316, %v1405
      %v1407 = vpop.f32.mrf.mxu0
      %v1408 = vadd.f32 %v1316, %v1407
      %1409 = vmatmul.bf16.gmra.mxu0 %v1289
      %v1410 = vpop.f32.mrf.mxu0
      %v1411 = vadd.f32 %v1316, %v1410
      %v1412 = vpop.f32.mrf.mxu0
      %v1413 = vadd.f32 %v1316, %v1412
      %1414 = vmatmul.bf16.gmra.mxu0 %v1290
      %v1415 = vpop.f32.mrf.mxu0
      %v1416 = vadd.f32 %v1316, %v1415
      %v1417 = vpop.f32.mrf.mxu0
      %v1418 = vadd.f32 %v1316, %v1417
      %1419 = vmatmul.bf16.gmra.mxu0 %v1291
      %v1420 = vpop.f32.mrf.mxu0
      %v1421 = vadd.f32 %v1316, %v1420
      %v1422 = vpop.f32.mrf.mxu0
      %v1423 = vadd.f32 %v1316, %v1422
      %1424 = vmatmul.bf16.gmra.mxu0 %v1292
      %v1425 = vpop.f32.mrf.mxu0
      %v1426 = vadd.f32 %v1316, %v1425
      %v1427 = vpop.f32.mrf.mxu0
      %v1428 = vadd.f32 %v1316, %v1427
      %1429 = vmatmul.bf16.gmra.mxu0 %v1293
      %v1430 = vpop.f32.mrf.mxu0
      %v1431 = vadd.f32 %v1316, %v1430
      %v1432 = vpop.f32.mrf.mxu0
      %v1433 = vadd.f32 %v1316, %v1432
      %1434 = vmatmul.bf16.gmra.mxu0 %v1294
      %v1435 = vpop.f32.mrf.mxu0
      %v1436 = vadd.f32 %v1316, %v1435
      %v1437 = vpop.f32.mrf.mxu0
      %v1438 = vadd.f32 %v1316, %v1437
      %1439 = vmatmul.bf16.gmra.mxu0 %v1295
      %v1440 = vpop.f32.mrf.mxu0
      %v1441 = vadd.f32 %v1316, %v1440
      %v1442 = vpop.f32.mrf.mxu0
      %v1443 = vadd.f32 %v1316, %v1442
      %1444 = vmatmul.bf16.gmra.mxu0 %v1296
      %v1445 = vpop.f32.mrf.mxu0
      %v1446 = vadd.f32 %v1316, %v1445
      %v1447 = vpop.f32.mrf.mxu0
      %v1448 = vadd.f32 %v1316, %v1447
      %1449 = vmatmul.bf16.gmra.mxu0 %v1297
      %v1450 = vpop.f32.mrf.mxu0
      %v1451 = vadd.f32 %v1316, %v1450
      %v1452 = vpop.f32.mrf.mxu0
      %v1453 = vadd.f32 %v1316, %v1452
      %1454 = vdwg.mxu0
      %v1455 = vmax.f32 %v1376, 0.0
      %v1456 = vmax.f32 %v1378, 0.0
      %v1457 = vmax.f32 %v1381, 0.0
      %v1458 = vmax.f32 %v1383, 0.0
      %v1459 = vmax.f32 %v1386, 0.0
      %v1460 = vmax.f32 %v1388, 0.0
      %v1461 = vmax.f32 %v1391, 0.0
      %v1462 = vmax.f32 %v1393, 0.0
      %v1463 = vmax.f32 %v1396, 0.0
      %v1464 = vmax.f32 %v1398, 0.0
      %v1465 = vmax.f32 %v1401, 0.0
      %v1466 = vmax.f32 %v1403, 0.0
      %v1467 = vmax.f32 %v1406, 0.0
      %v1468 = vmax.f32 %v1408, 0.0
      %v1469 = vmax.f32 %v1411, 0.0
      %v1470 = vmax.f32 %v1413, 0.0
      %v1471 = vmax.f32 %v1416, 0.0
      %v1472 = vmax.f32 %v1418, 0.0
      %v1473 = vmax.f32 %v1421, 0.0
      %v1474 = vmax.f32 %v1423, 0.0
      %v1475 = vmax.f32 %v1426, 0.0
      %v1476 = vmax.f32 %v1428, 0.0
      %v1477 = vmax.f32 %v1431, 0.0
      %v1478 = vmax.f32 %v1433, 0.0
      %v1479 = vmax.f32 %v1436, 0.0
      %v1480 = vmax.f32 %v1438, 0.0
      %v1481 = vmax.f32 %v1441, 0.0
      %v1482 = vmax.f32 %v1443, 0.0
      %v1483 = vmax.f32 %v1446, 0.0
      %v1484 = vmax.f32 %v1448, 0.0
      %v1485 = vmax.f32 %v1451, 0.0
      %v1486 = vmax.f32 %v1453, 0.0
      %v1487 = vpack.c.bf16 %v1456, %v1455
      %v1488 = vpack.c.bf16 %v1458, %v1457
      %v1489 = vpack.c.bf16 %v1460, %v1459
      %v1490 = vpack.c.bf16 %v1462, %v1461
      %v1491 = vpack.c.bf16 %v1464, %v1463
      %v1492 = vpack.c.bf16 %v1466, %v1465
      %v1493 = vpack.c.bf16 %v1468, %v1467
      %v1494 = vpack.c.bf16 %v1470, %v1469
      %v1495 = vpack.c.bf16 %v1472, %v1471
      %v1496 = vpack.c.bf16 %v1474, %v1473
      %v1497 = vpack.c.bf16 %v1476, %v1475
      %v1498 = vpack.c.bf16 %v1478, %v1477
      %v1499 = vpack.c.bf16 %v1480, %v1479
      %v1500 = vpack.c.bf16 %v1482, %v1481
      %v1501 = vpack.c.bf16 %v1484, %v1483
      %v1502 = vpack.c.bf16 %v1486, %v1485
      %v1503 = vld [vmem:[%s11] sm:$0xf]
      %v1504 = vld [vmem:[%s11 + $0x4] sm:$0xf]
      %v1505 = vld [vmem:[%s11 + $0x8] sm:$0xf]
      %v1506 = vld [vmem:[%s11 + $0xc] sm:$0xf]
      %v1507 = vld [vmem:[%s11 + $0x10] sm:$0xf]
      %v1508 = vld [vmem:[%s11 + $0x14] sm:$0xf]
      %v1509 = vld [vmem:[%s11 + $0x18] sm:$0xf]
      %v1510 = vld [vmem:[%s11 + $0x1c] sm:$0xf]
      %v1511 = vld [vmem:[%s11 + $0x20] sm:$0xf]
      %v1512 = vld [vmem:[%s11 + $0x24] sm:$0xf]
      %v1513 = vld [vmem:[%s11 + $0x28] sm:$0xf]
      %v1514 = vld [vmem:[%s11 + $0x2c] sm:$0xf]
      %v1515 = vld [vmem:[%s11 + $0x30] sm:$0xf]
      %v1516 = vld [vmem:[%s11 + $0x34] sm:$0xf]
      %v1517 = vld [vmem:[%s11 + $0x38] sm:$0xf]
      %v1518 = vld [vmem:[%s11 + $0x3c] sm:$0xf]
      %v1519 = vld [vmem:[%s12] sm:$0x1]
      %v1521 = vperm.slane %v1519, 0
      %v1539 = vunpack.c.l.b16 %v1503
      %v1540 = vunpack.c.l.b16 %v1504
      %v1541 = vunpack.c.l.b16 %v1505
      %v1542 = vunpack.c.l.b16 %v1506
      %v1543 = vunpack.c.l.b16 %v1507
      %v1544 = vunpack.c.l.b16 %v1508
      %v1545 = vunpack.c.l.b16 %v1509
      %v1546 = vunpack.c.l.b16 %v1510
      %v1547 = vunpack.c.l.b16 %v1511
      %v1548 = vunpack.c.l.b16 %v1512
      %v1549 = vunpack.c.l.b16 %v1513
      %v1550 = vunpack.c.l.b16 %v1514
      %v1551 = vunpack.c.l.b16 %v1515
      %v1552 = vunpack.c.l.b16 %v1516
      %v1553 = vunpack.c.l.b16 %v1517
      %v1554 = vunpack.c.l.b16 %v1518
      %v1555 = vpack.c.b16 %v1540, %v1539
      %v1556 = vpack.c.b16 %v1542, %v1541
      %v1557 = vpack.c.b16 %v1544, %v1543
      %v1558 = vpack.c.b16 %v1546, %v1545
      %v1559 = vpack.c.b16 %v1548, %v1547
      %v1560 = vpack.c.b16 %v1550, %v1549
      %v1561 = vpack.c.b16 %v1552, %v1551
      %v1562 = vpack.c.b16 %v1554, %v1553
      %1571 = vmatpush.bf16.msra.mxu0 %v1562
      %1572 = vmatpush.bf16.msra.mxu0 %v1561
      %1573 = vmatpush.bf16.msra.mxu0 %v1560
      %1574 = vmatpush.bf16.msra.mxu0 %v1559
      %1575 = vmatpush.bf16.msra.mxu0 %v1558
      %1576 = vmatpush.bf16.msra.mxu0 %v1557
      %1577 = vmatpush.bf16.msra.mxu0 %v1556
      %1578 = vmatpush.bf16.msra.mxu0 %v1555
      %1579 = vmatmul.bf16.gmra.mxu0 %v1487
      %v1580 = vpop.f32.mrf.mxu0
      %v1581 = vadd.f32 %v1521, %v1580
      %v1582 = vpop.f32.mrf.mxu0
      %v1583 = vadd.f32 %v1521, %v1582
      %1584 = vmatmul.bf16.gmra.mxu0 %v1488
      %v1585 = vpop.f32.mrf.mxu0
      %v1586 = vadd.f32 %v1521, %v1585
      %v1587 = vpop.f32.mrf.mxu0
      %v1588 = vadd.f32 %v1521, %v1587
      %1589 = vmatmul.bf16.gmra.mxu0 %v1489
      %v1590 = vpop.f32.mrf.mxu0
      %v1591 = vadd.f32 %v1521, %v1590
      %v1592 = vpop.f32.mrf.mxu0
      %v1593 = vadd.f32 %v1521, %v1592
      %1594 = vmatmul.bf16.gmra.mxu0 %v1490
      %v1595 = vpop.f32.mrf.mxu0
      %v1596 = vadd.f32 %v1521, %v1595
      %v1597 = vpop.f32.mrf.mxu0
      %v1598 = vadd.f32 %v1521, %v1597
      %1599 = vmatmul.bf16.gmra.mxu0 %v1491
      %v1600 = vpop.f32.mrf.mxu0
      %v1601 = vadd.f32 %v1521, %v1600
      %v1602 = vpop.f32.mrf.mxu0
      %v1603 = vadd.f32 %v1521, %v1602
      %1604 = vmatmul.bf16.gmra.mxu0 %v1492
      %v1605 = vpop.f32.mrf.mxu0
      %v1606 = vadd.f32 %v1521, %v1605
      %v1607 = vpop.f32.mrf.mxu0
      %v1608 = vadd.f32 %v1521, %v1607
      %1609 = vmatmul.bf16.gmra.mxu0 %v1493
      %v1610 = vpop.f32.mrf.mxu0
      %v1611 = vadd.f32 %v1521, %v1610
      %v1612 = vpop.f32.mrf.mxu0
      %v1613 = vadd.f32 %v1521, %v1612
      %1614 = vmatmul.bf16.gmra.mxu0 %v1494
      %v1615 = vpop.f32.mrf.mxu0
      %v1616 = vadd.f32 %v1521, %v1615
      %v1617 = vpop.f32.mrf.mxu0
      %v1618 = vadd.f32 %v1521, %v1617
      %1619 = vmatmul.bf16.gmra.mxu0 %v1495
      %v1620 = vpop.f32.mrf.mxu0
      %v1621 = vadd.f32 %v1521, %v1620
      %v1622 = vpop.f32.mrf.mxu0
      %v1623 = vadd.f32 %v1521, %v1622
      %1624 = vmatmul.bf16.gmra.mxu0 %v1496
      %v1625 = vpop.f32.mrf.mxu0
      %v1626 = vadd.f32 %v1521, %v1625
      %v1627 = vpop.f32.mrf.mxu0
      %v1628 = vadd.f32 %v1521, %v1627
      %1629 = vmatmul.bf16.gmra.mxu0 %v1497
      %v1630 = vpop.f32.mrf.mxu0
      %v1631 = vadd.f32 %v1521, %v1630
      %v1632 = vpop.f32.mrf.mxu0
      %v1633 = vadd.f32 %v1521, %v1632
      %1634 = vmatmul.bf16.gmra.mxu0 %v1498
      %v1635 = vpop.f32.mrf.mxu0
      %v1636 = vadd.f32 %v1521, %v1635
      %v1637 = vpop.f32.mrf.mxu0
      %v1638 = vadd.f32 %v1521, %v1637
      %1639 = vmatmul.bf16.gmra.mxu0 %v1499
      %v1640 = vpop.f32.mrf.mxu0
      %v1641 = vadd.f32 %v1521, %v1640
      %v1642 = vpop.f32.mrf.mxu0
      %v1643 = vadd.f32 %v1521, %v1642
      %1644 = vmatmul.bf16.gmra.mxu0 %v1500
      %v1645 = vpop.f32.mrf.mxu0
      %v1646 = vadd.f32 %v1521, %v1645
      %v1647 = vpop.f32.mrf.mxu0
      %v1648 = vadd.f32 %v1521, %v1647
      %1649 = vmatmul.bf16.gmra.mxu0 %v1501
      %v1650 = vpop.f32.mrf.mxu0
      %v1651 = vadd.f32 %v1521, %v1650
      %v1652 = vpop.f32.mrf.mxu0
      %v1653 = vadd.f32 %v1521, %v1652
      %1654 = vmatmul.bf16.gmra.mxu0 %v1502
      %v1655 = vpop.f32.mrf.mxu0
      %v1656 = vadd.f32 %v1521, %v1655
      %v1657 = vpop.f32.mrf.mxu0
      %v1658 = vadd.f32 %v1521, %v1657
      %1659 = vdwg.mxu0
      %1660 = vst.msk [vmem:[%s442] sm:$0xff] %vm529, %v1581
      %1661 = vst.msk [vmem:[%s442 + $0x8] sm:$0xff] %vm529, %v1583
      %1662 = vst.msk [vmem:[%s442 + $0x10] sm:$0xff] %vm529, %v1586
      %1663 = vst.msk [vmem:[%s442 + $0x18] sm:$0xff] %vm529, %v1588
      %1664 = vst.msk [vmem:[%s442 + $0x20] sm:$0xff] %vm529, %v1591
      %1665 = vst.msk [vmem:[%s442 + $0x28] sm:$0xff] %vm529, %v1593
      %1666 = vst.msk [vmem:[%s442 + $0x30] sm:$0xff] %vm529, %v1596
      %1667 = vst.msk [vmem:[%s442 + $0x38] sm:$0xff] %vm529, %v1598
      %1668 = vst.msk [vmem:[%s442 + $0x40] sm:$0xff] %vm529, %v1601
      %1669 = vst.msk [vmem:[%s442 + $0x48] sm:$0xff] %vm529, %v1603
      %1670 = vst.msk [vmem:[%s442 + $0x50] sm:$0xff] %vm529, %v1606
      %1671 = vst.msk [vmem:[%s442 + $0x58] sm:$0xff] %vm529, %v1608
      %1672 = vst.msk [vmem:[%s442 + $0x60] sm:$0xff] %vm529, %v1611
      %1673 = vst.msk [vmem:[%s442 + $0x68] sm:$0xff] %vm529, %v1613
      %1674 = vst.msk [vmem:[%s442 + $0x70] sm:$0xff] %vm529, %v1616
      %1675 = vst.msk [vmem:[%s442 + $0x78] sm:$0xff] %vm529, %v1618
      %1676 = vst.msk [vmem:[%s442 + $0x80] sm:$0xff] %vm529, %v1621
      %1677 = vst.msk [vmem:[%s442 + $0x88] sm:$0xff] %vm529, %v1623
      %1678 = vst.msk [vmem:[%s442 + $0x90] sm:$0xff] %vm529, %v1626
      %1679 = vst.msk [vmem:[%s442 + $0x98] sm:$0xff] %vm529, %v1628
      %1680 = vst.msk [vmem:[%s442 + $0xa0] sm:$0xff] %vm529, %v1631
      %1681 = vst.msk [vmem:[%s442 + $0xa8] sm:$0xff] %vm529, %v1633
      %1682 = vst.msk [vmem:[%s442 + $0xb0] sm:$0xff] %vm529, %v1636
      %1683 = vst.msk [vmem:[%s442 + $0xb8] sm:$0xff] %vm529, %v1638
      %1684 = vst.msk [vmem:[%s442 + $0xc0] sm:$0xff] %vm529, %v1641
      %1685 = vst.msk [vmem:[%s442 + $0xc8] sm:$0xff] %vm529, %v1643
      %1686 = vst.msk [vmem:[%s442 + $0xd0] sm:$0xff] %vm529, %v1646
      %1687 = vst.msk [vmem:[%s442 + $0xd8] sm:$0xff] %vm529, %v1648
      %1688 = vst.msk [vmem:[%s442 + $0xe0] sm:$0xff] %vm529, %v1651
      %1689 = vst.msk [vmem:[%s442 + $0xe8] sm:$0xff] %vm529, %v1653
      %1690 = vst.msk [vmem:[%s442 + $0xf0] sm:$0xff] %vm529, %v1656
      %1691 = vst.msk [vmem:[%s442 + $0xf8] sm:$0xff] %vm529, %v1658
      %s1692 = smul.u32 32, %s24
      %p1693 = scmp.lt.s32.totalorder %s1692, 63
      %s1694 = scalar_select %p1693, %s1692, 63
      %s1695 = smul.addr %s1694, 8
      %s1696 = scalar_lea.vmem %s13, %s1695
      // Predicated region
      $region73: #{tpu_custom_call.1} parent=71 // pred_check
        %p1697 = pneg %p320
      $region74: #{tpu_custom_call.1} parent=71 // pred_check_branch
        %1699 = sbr.rel (%p1697) target = $region76
      $region75: #{tpu_custom_call.1} parent=71 // pred_region
        %s1700 = smul.u32 32, %s24
      $region76: #{tpu_custom_call.1} parent=71 // pred_fallthru
        _
    $region72: #{tpu_custom_call.1} parent=5 // pred_fallthru
      _
    %p1701 = scmp.le.s32.totalorder 2, %s19
    // Predicated region
    $region77: #{tpu_custom_call.1} parent=5 // pred_check
      %p1702 = pneg %p1701
    $region78: #{tpu_custom_call.1} parent=5 // pred_check_branch
      %1704 = sbr.rel (%p1702) target = $region80
    $region79: #{tpu_custom_call.1} parent=5 // pred_region
      %s1705 = ssub.s32 %s19, 2
      // Predicated region
      $region81: #{tpu_custom_call.1} parent=79 // pred_check
        %p1706 = pneg %p326
      $region82: #{tpu_custom_call.1} parent=79 // pred_check_branch
        %1708 = sbr.rel (%p1706) target = $region84
      $region83: #{tpu_custom_call.1} parent=79 // pred_region
        %s1709 = smul.u32 32, %s25
        %p1710 = scmp.lt.s32.totalorder %s1709, 63
        %s1711 = scalar_select %p1710, %s1709, 63
        %s1712 = smul.addr %s1711, 8
        %s1713 = scalar_lea.vmem %s13, %s1712
      $region84: #{tpu_custom_call.1} parent=79 // pred_fallthru
        _
    $region80: #{tpu_custom_call.1} parent=5 // pred_fallthru
      _
  $region6: #{tpu_custom_call.1} parent=0 // loop_footer
    %s23 = sadd.s32 1, %s19
  $region7: #{tpu_custom_call.1} parent=0 // loop_footer_branch
    %18 = sbr.rel target = $region3
  $region8: #{tpu_custom_call.1} parent=0 // loop_exit
    _

</llo_original>
